<compile_context>
chip_gen: v7x
topology: tpu7x:2x2x1
jax: 0.10.0
libtpu: 0.0.40
codegen_flags: <defaults>
</compile_context>

<pallas_src>
import functools
import math

import jax
import jax.numpy as jnp
from jax.experimental import pallas as pl
from jax.experimental.pallas import tpu as pltpu


def _attention_kernel(x_ref, wqkv_ref, bqkv_ref, wproj_ref, bproj_ref, o_ref,
                      *, num_heads: int, n_valid: int):
    # x_ref:     (BW, N, C)  BW windows per grid step (compute dtype, e.g. bf16)
    # wqkv_ref:  (C, 3C)     transposed QKV weight, scale pre-folded into Q cols
    # bqkv_ref:  (1, 3C)     f32 bias, scale pre-folded into Q part
    # wproj_ref: (C, C)      transposed proj weight
    # bproj_ref: (1, C)      f32 bias
    # o_ref:     (BW, N, C)  output dtype of the original input
    bw, n, c = x_ref.shape
    hd = c // num_heads
    h = num_heads
    op_dtype = x_ref.dtype  # MXU operand dtype (bf16 by default)

    # ---- QKV projection over the whole (BW*N, C) slab: one big MXU matmul ----
    x2 = x_ref[...].reshape(bw * n, c)                  # leading-dim merge: layout-free
    qkv = jnp.dot(x2, wqkv_ref[...],
                  preferred_element_type=jnp.float32) + bqkv_ref[...]   # (BW*N, 3C) f32

    q = qkv[:, 0 * c:1 * c].astype(op_dtype)            # scale already folded in
    k = qkv[:, 1 * c:2 * c].astype(op_dtype)
    v = qkv[:, 2 * c:3 * c].astype(op_dtype)

    # ---- Single fused head relayout (replaces 2*H slice/concat copies) ----
    # (BW*N, C) -> (H*BW, N, hd); K is produced pre-transposed to (H*BW, hd, N)
    # so the score contraction below is a native (contract-sublane) matmul.
    qh = q.reshape(bw, n, h, hd).transpose(2, 0, 1, 3).reshape(h * bw, n, hd)
    kh_t = k.reshape(bw, n, h, hd).transpose(2, 0, 3, 1).reshape(h * bw, hd, n)
    vh = v.reshape(bw, n, h, hd).transpose(2, 0, 1, 3).reshape(h * bw, n, hd)

    # ---- Scores: one batched contraction over the fused (head*window) axis ----
    s = jnp.einsum('znd,zdm->znm', qh, kh_t,
                   preferred_element_type=jnp.float32)   # (H*BW, N, N) f32

    if n_valid < n:  # static: only emitted when N was padded in the wrapper
        key_ok = jax.lax.broadcasted_iota(jnp.int32, (1, n, n), 2) < n_valid
        s = jnp.where(key_ok, s, -1e30)

    # ---- Softmax (f32), normalized AFTER the PV matmul ----
    m = jnp.max(s, axis=-1, keepdims=True)
    p = jnp.exp(s - m)                                   # unnormalized probs
    l = jnp.sum(p, axis=-1, keepdims=True)               # row sums (f32)
    o = jnp.einsum('znm,zmd->znd', p.astype(op_dtype), vh,
                   preferred_element_type=jnp.float32)   # (H*BW, N, hd) f32
    o = o * pl.reciprocal(l, approx=True)                # EUP divide, (N,hd) mul

    # ---- Heads back onto the lane axis: (H*BW, N, hd) -> (BW*N, C) ----
    merged = (o.astype(op_dtype)
              .reshape(h, bw, n, hd)
              .transpose(1, 2, 0, 3)
              .reshape(bw * n, c))

    # ---- Output projection over the whole slab ----
    out = jnp.dot(merged, wproj_ref[...],
                  preferred_element_type=jnp.float32) + bproj_ref[...]
    o_ref[...] = out.reshape(bw, n, c).astype(o_ref.dtype)


def _vmem_capacity_bytes():
    """Generation-aware VMEM capacity (128 MiB v5e/v6e, 64 MiB v7x)."""
    try:
        info = pltpu.get_tpu_info()
        cap = getattr(info, "vmem_capacity_bytes", None)
        if cap:
            return int(cap)
    except Exception:
        pass
    return 64 * 1024 * 1024  # conservative fallback (v7x per-core)


def _choose_windows_per_step(B_, N, C, num_heads, itemsize, block_budget):
    """Pick BW | B_ so one grid step covers >=256 projection rows (fills the
    256-row MXU on v6e/v7x; 128 rows already fills v5e and the loop settles
    there if the budget is tight) while the per-step slabs fit block_budget."""
    target_rows = 256
    best = 1
    for bw in (d for d in range(1, B_ + 1) if B_ % d == 0):
        rows = bw * N
        approx_bytes = (2 * 2 * rows * C * itemsize          # dbl-buffered x + out blocks
                        + 4 * rows * 3 * C                   # f32 qkv slab
                        + 3 * rows * C * itemsize            # q/k/v relayout copies
                        + 2 * 4 * num_heads * bw * N * N)    # f32 score + exp slabs
        if bw > 1 and approx_bytes > block_budget:
            break
        best = bw
        if rows >= target_rows:
            break
    return best


def cross_window_attention(x, w_qkv, b_qkv, w_proj, b_proj, *, num_heads: int,
                           compute_dtype=jnp.bfloat16):
    """x: (B_, N, C); w_qkv: (3C, C) torch layout; b_qkv: (3C,);
       w_proj: (C, C) torch layout; b_proj: (C,)."""
    B_, N, C = x.shape
    assert C % num_heads == 0, "C must be divisible by num_heads"
    head_dim = C // num_heads
    scale = head_dim ** (-0.5)
    out_dtype = x.dtype

    # Fold the attention scale into the Q columns of the QKV weight/bias
    # (one-time constant transform; removes a per-step (BW*N, C) VPU multiply).
    scale_vec = jnp.concatenate(
        [jnp.full((C,), scale, jnp.float32), jnp.ones((2 * C,), jnp.float32)])
    wqkv_t = (w_qkv.T.astype(jnp.float32) * scale_vec[None, :]).astype(compute_dtype)
    bqkv2 = (b_qkv.astype(jnp.float32) * scale_vec).reshape(1, 3 * C)
    wproj_t = w_proj.T.astype(compute_dtype)
    bproj2 = b_proj.astype(jnp.float32).reshape(1, C)
    xc = x.astype(compute_dtype)

    # Pad N to a multiple of 8 so (BW,N,C) <-> (BW*N,C) reshapes are layout-free
    # and output stores stay sublane-dense; padded key cols are masked in-kernel.
    Np = ((N + 7) // 8) * 8
    if Np != N:
        xc = jnp.pad(xc, ((0, 0), (0, Np - N), (0, 0)))

    itemsize = jnp.dtype(compute_dtype).itemsize
    vmem_cap = _vmem_capacity_bytes()
    vmem_limit = int(min(64 * 1024 * 1024, vmem_cap // 2))  # 64 MiB v5e/v6e, 32 MiB v7x
    # Charge resident weights (assume double-buffered since we don't force
    # pipeline_mode=pl.Buffered(1) on them) plus a small compiler headroom.
    # TODO(synk): pl.Buffered(1) on the weight specs would free half of this on v7x.
    weight_bytes = 2 * ((C * 3 * C + C * C) * itemsize + (3 * C + C) * 4)
    block_budget = max(vmem_limit - weight_bytes - (2 << 20), 1 << 20)

    BW = _choose_windows_per_step(B_, Np, C, num_heads, itemsize, block_budget)
    grid = (B_ // BW,)

    kernel = functools.partial(_attention_kernel, num_heads=num_heads, n_valid=N)

    out = pl.pallas_call(
        kernel,
        out_shape=jax.ShapeDtypeStruct((B_, Np, C), out_dtype),
        grid_spec=pltpu.PrefetchScalarGridSpec(
            num_scalar_prefetch=0,
            grid=grid,
            in_specs=[
                pl.BlockSpec((BW, Np, C), lambda b: (b, 0, 0)),
                # Weights/biases: constant index_map -> fetched once and reused
                # across all grid steps (no per-step re-DMA).
                pl.BlockSpec((C, 3 * C), lambda b: (0, 0)),
                pl.BlockSpec((1, 3 * C), lambda b: (0, 0)),
                pl.BlockSpec((C, C), lambda b: (0, 0)),
                pl.BlockSpec((1, C), lambda b: (0, 0)),
            ],
            out_specs=pl.BlockSpec((BW, Np, C), lambda b: (b, 0, 0)),
        ),
        compiler_params=pltpu.CompilerParams(
            dimension_semantics=("parallel",),
            vmem_limit_bytes=vmem_limit,
        ),
    )(xc, wqkv_t, bqkv2, wproj_t, bproj2)

    if Np != N:
        out = out[:, :N, :]
    return out


def _reference(x, w_qkv, b_qkv, w_proj, b_proj, num_heads):
    """Pure-JAX f32 reference mirroring the PyTorch forward (eval mode)."""
    B_, N, C = x.shape
    hd = C // num_heads
    scale = hd ** (-0.5)
    qkv = x @ w_qkv.T + b_qkv                              # (B,N,3C)
    qkv = qkv.reshape(B_, N, 3, num_heads, hd).transpose(2, 0, 3, 1, 4)
    q, k, v = qkv[0], qkv[1], qkv[2]                       # (B,H,N,hd)
    q = q * scale
    attn = q @ jnp.swapaxes(k, -2, -1)                     # (B,H,N,N)
    attn = jax.nn.softmax(attn, axis=-1)
    out = attn @ v                                         # (B,H,N,hd)
    out = jnp.swapaxes(out, 1, 2).reshape(B_, N, C)
    return out @ w_proj.T + b_proj


if __name__ == "__main__":
    # Small shapes: 2 windows, 8 tokens per window, dim=32, 4 heads (head_dim=8).
    B_, N, C, num_heads = 2, 8, 32, 4

    key = jax.random.PRNGKey(0)
    kx, k1, k2, k3, k4 = jax.random.split(key, 5)

    x = jax.random.normal(kx, (B_, N, C), dtype=jnp.float32)

    # Deterministic parameter init (uniform, roughly like torch Linear init scale).
    bound = 1.0 / math.sqrt(C)
    w_qkv = jax.random.uniform(k1, (3 * C, C), jnp.float32, -bound, bound)
    b_qkv = jax.random.uniform(k2, (3 * C,), jnp.float32, -bound, bound)
    w_proj = jax.random.uniform(k3, (C, C), jnp.float32, -bound, bound)
    b_proj = jax.random.uniform(k4, (C,), jnp.float32, -bound, bound)

    out = cross_window_attention(x, w_qkv, b_qkv, w_proj, b_proj, num_heads=num_heads)
    out = jax.block_until_ready(out)

    ref = _reference(x, w_qkv, b_qkv, w_proj, b_proj, num_heads)
    assert out.shape == (B_, N, C)
    # bf16 MXU operands (f32 accumulation / f32 softmax) -> relaxed tolerance.
    assert jnp.allclose(out, ref, atol=3e-2, rtol=3e-2), "mismatch vs reference"

    print("KERNEL_OK")
</pallas_src>

<mosaic_0001>
module attributes {stable_mosaic.version = 11 : i64} {
  func.func @_attention_kernel(%arg0: i32, %arg1: memref<2x8x32xbf16, #tpu.memory_space<vmem>>, %arg2: memref<32x96xbf16, #tpu.memory_space<vmem>>, %arg3: memref<1x96xf32, #tpu.memory_space<vmem>>, %arg4: memref<32x32xbf16, #tpu.memory_space<vmem>>, %arg5: memref<1x32xf32, #tpu.memory_space<vmem>>, %arg6: memref<2x8x32xf32, #tpu.memory_space<vmem>>) attributes {dimension_semantics = [#tpu.dimension_semantics<parallel>], iteration_bounds = array<i64: 1>, scalar_prefetch = 0 : i64, scratch_operands = 0 : i64, tpu.core_type = #tpu.core_type<tc>, window_params = [{transform_indices = @transform_0, window_bounds = array<i64: 2, 8, 32>}, {pipeline_mode = #tpu.pipeline_mode<synchronous>, transform_indices = @transform_1, window_bounds = array<i64: 32, 96>}, {pipeline_mode = #tpu.pipeline_mode<synchronous>, transform_indices = @transform_2, window_bounds = array<i64: 1, 96>}, {pipeline_mode = #tpu.pipeline_mode<synchronous>, transform_indices = @transform_3, window_bounds = array<i64: 32, 32>}, {pipeline_mode = #tpu.pipeline_mode<synchronous>, transform_indices = @transform_4, window_bounds = array<i64: 1, 32>}, {transform_indices = @transform_5, window_bounds = array<i64: 2, 8, 32>}]} {
    %c0 = arith.constant 0 : index
    %c0_0 = arith.constant 0 : index
    %c0_1 = arith.constant 0 : index
    %0 = vector.load %arg1[%c0, %c0_0, %c0_1] : memref<2x8x32xbf16, #tpu.memory_space<vmem>>, vector<2x8x32xbf16>
    %1 = vector.shape_cast %0 : vector<2x8x32xbf16> to vector<16x32xbf16>
    %c0_2 = arith.constant 0 : index
    %c0_3 = arith.constant 0 : index
    %2 = vector.load %arg2[%c0_2, %c0_3] : memref<32x96xbf16, #tpu.memory_space<vmem>>, vector<32x96xbf16>
    %cst = arith.constant dense<0.000000e+00> : vector<16x96xf32>
    %3 = tpu.matmul %1, %2, %cst {dimension_numbers = #tpu.dot_dimension_numbers<[1], [0], [0], [1], [0, 0, 1, 1], [], []>} : vector<16x32xbf16>, vector<32x96xbf16>, vector<16x96xf32> -> vector<16x96xf32>
    %c0_4 = arith.constant 0 : index
    %c0_5 = arith.constant 0 : index
    %4 = vector.load %arg3[%c0_4, %c0_5] : memref<1x96xf32, #tpu.memory_space<vmem>>, vector<1x96xf32>
    %5 = vector.broadcast %4 : vector<1x96xf32> to vector<16x96xf32>
    %6 = arith.addf %3, %5 : vector<16x96xf32>
    %7 = vector.extract_strided_slice %6 {offsets = [0, 0], sizes = [16, 32], strides = [1, 1]} : vector<16x96xf32> to vector<16x32xf32>
    %8 = arith.truncf %7 : vector<16x32xf32> to vector<16x32xbf16>
    %9 = vector.extract_strided_slice %6 {offsets = [0, 32], sizes = [16, 32], strides = [1, 1]} : vector<16x96xf32> to vector<16x32xf32>
    %10 = arith.truncf %9 : vector<16x32xf32> to vector<16x32xbf16>
    %11 = vector.extract_strided_slice %6 {offsets = [0, 64], sizes = [16, 32], strides = [1, 1]} : vector<16x96xf32> to vector<16x32xf32>
    %12 = arith.truncf %11 : vector<16x32xf32> to vector<16x32xbf16>
    %13 = vector.shape_cast %8 : vector<16x32xbf16> to vector<2x8x4x8xbf16>
    %14 = tpu.transpose %13, [2, 0, 1, 3] : vector<2x8x4x8xbf16> -> vector<4x2x8x8xbf16>
    %15 = vector.shape_cast %14 : vector<4x2x8x8xbf16> to vector<8x8x8xbf16>
    %16 = vector.shape_cast %10 : vector<16x32xbf16> to vector<2x8x4x8xbf16>
    %17 = tpu.transpose %16, [2, 0, 3, 1] : vector<2x8x4x8xbf16> -> vector<4x2x8x8xbf16>
    %18 = vector.shape_cast %17 : vector<4x2x8x8xbf16> to vector<8x8x8xbf16>
    %19 = vector.shape_cast %12 : vector<16x32xbf16> to vector<2x8x4x8xbf16>
    %20 = tpu.transpose %19, [2, 0, 1, 3] : vector<2x8x4x8xbf16> -> vector<4x2x8x8xbf16>
    %21 = vector.shape_cast %20 : vector<4x2x8x8xbf16> to vector<8x8x8xbf16>
    "tpu.trace_start"() <{level = 10 : i32, message = "znd,zdm->znm"}> : () -> ()
    %cst_6 = arith.constant dense<0.000000e+00> : vector<8x8x8xf32>
    %22 = tpu.matmul %15, %18, %cst_6 {dimension_numbers = #tpu.dot_dimension_numbers<[2], [1], [1], [2], [0, 0, 0, 1, 1, 2], [0], [0]>} : vector<8x8x8xbf16>, vector<8x8x8xbf16>, vector<8x8x8xf32> -> vector<8x8x8xf32>
    "tpu.trace_stop"() : () -> ()
    %cst_7 = arith.constant dense<0xFF800000> : vector<8x8xf32>
    %23 = vector.multi_reduction <maximumf>, %22, %cst_7 [2] : vector<8x8x8xf32> to vector<8x8xf32>
    %24 = vector.shape_cast %23 : vector<8x8xf32> to vector<8x8x1xf32>
    %25 = vector.broadcast %24 : vector<8x8x1xf32> to vector<8x8x8xf32>
    %26 = arith.subf %22, %25 : vector<8x8x8xf32>
    %27 = math.exp %26 : vector<8x8x8xf32>
    %cst_8 = arith.constant dense<0.000000e+00> : vector<8x8xf32>
    %28 = vector.multi_reduction <add>, %27, %cst_8 [2] : vector<8x8x8xf32> to vector<8x8xf32>
    %29 = vector.shape_cast %28 : vector<8x8xf32> to vector<8x8x1xf32>
    %30 = arith.truncf %27 : vector<8x8x8xf32> to vector<8x8x8xbf16>
    "tpu.trace_start"() <{level = 10 : i32, message = "znm,zmd->znd"}> : () -> ()
    %cst_9 = arith.constant dense<0.000000e+00> : vector<8x8x8xf32>
    %31 = tpu.matmul %30, %21, %cst_9 {dimension_numbers = #tpu.dot_dimension_numbers<[2], [1], [1], [2], [0, 0, 0, 1, 1, 2], [0], [0]>} : vector<8x8x8xbf16>, vector<8x8x8xbf16>, vector<8x8x8xf32> -> vector<8x8x8xf32>
    "tpu.trace_stop"() : () -> ()
    %32 = tpu.reciprocal %29 {approx = true} : vector<8x8x1xf32> -> vector<8x8x1xf32>
    %33 = vector.broadcast %32 : vector<8x8x1xf32> to vector<8x8x8xf32>
    %34 = arith.mulf %31, %33 : vector<8x8x8xf32>
    %35 = arith.truncf %34 : vector<8x8x8xf32> to vector<8x8x8xbf16>
    %36 = vector.shape_cast %35 : vector<8x8x8xbf16> to vector<4x2x8x8xbf16>
    %37 = tpu.transpose %36, [1, 2, 0, 3] : vector<4x2x8x8xbf16> -> vector<2x8x4x8xbf16>
    %38 = vector.shape_cast %37 : vector<2x8x4x8xbf16> to vector<16x32xbf16>
    %c0_10 = arith.constant 0 : index
    %c0_11 = arith.constant 0 : index
    %39 = vector.load %arg4[%c0_10, %c0_11] : memref<32x32xbf16, #tpu.memory_space<vmem>>, vector<32x32xbf16>
    %cst_12 = arith.constant dense<0.000000e+00> : vector<16x32xf32>
    %40 = tpu.matmul %38, %39, %cst_12 {dimension_numbers = #tpu.dot_dimension_numbers<[1], [0], [0], [1], [0, 0, 1, 1], [], []>} : vector<16x32xbf16>, vector<32x32xbf16>, vector<16x32xf32> -> vector<16x32xf32>
    %c0_13 = arith.constant 0 : index
    %c0_14 = arith.constant 0 : index
    %41 = vector.load %arg5[%c0_13, %c0_14] : memref<1x32xf32, #tpu.memory_space<vmem>>, vector<1x32xf32>
    %42 = vector.broadcast %41 : vector<1x32xf32> to vector<16x32xf32>
    %43 = arith.addf %40, %42 : vector<16x32xf32>
    %44 = vector.shape_cast %43 : vector<16x32xf32> to vector<2x8x32xf32>
    %c0_15 = arith.constant 0 : index
    %c0_16 = arith.constant 0 : index
    %c0_17 = arith.constant 0 : index
    %45 = vector.load %arg6[%c0_15, %c0_16, %c0_17] : memref<2x8x32xf32, #tpu.memory_space<vmem>>, vector<2x8x32xf32>
    tpu.vector_store %arg6[%c0_15, %c0_16, %c0_17], %44 {strides = array<i32>} : memref<2x8x32xf32, #tpu.memory_space<vmem>>, vector<2x8x32xf32>,
    return
  }
  func.func @transform_0(%arg0: i32) -> (i32, i32, i32) {
    %c0_i32 = arith.constant 0 : i32
    %c0_i32_0 = arith.constant 0 : i32
    %c0_i32_1 = arith.constant 0 : i32
    return %arg0, %c0_i32, %c0_i32_0 : i32, i32, i32
  }
  func.func @transform_1(%arg0: i32) -> (i32, i32) {
    %c0_i32 = arith.constant 0 : i32
    %c0_i32_0 = arith.constant 0 : i32
    %c0_i32_1 = arith.constant 0 : i32
    return %c0_i32, %c0_i32_0 : i32, i32
  }
  func.func @transform_2(%arg0: i32) -> (i32, i32) {
    %c0_i32 = arith.constant 0 : i32
    %c0_i32_0 = arith.constant 0 : i32
    %c0_i32_1 = arith.constant 0 : i32
    return %c0_i32, %c0_i32_0 : i32, i32
  }
  func.func @transform_3(%arg0: i32) -> (i32, i32) {
    %c0_i32 = arith.constant 0 : i32
    %c0_i32_0 = arith.constant 0 : i32
    %c0_i32_1 = arith.constant 0 : i32
    return %c0_i32, %c0_i32_0 : i32, i32
  }
  func.func @transform_4(%arg0: i32) -> (i32, i32) {
    %c0_i32 = arith.constant 0 : i32
    %c0_i32_0 = arith.constant 0 : i32
    %c0_i32_1 = arith.constant 0 : i32
    return %c0_i32, %c0_i32_0 : i32, i32
  }
  func.func @transform_5(%arg0: i32) -> (i32, i32, i32) {
    %c0_i32 = arith.constant 0 : i32
    %c0_i32_0 = arith.constant 0 : i32
    %c0_i32_1 = arith.constant 0 : i32
    return %arg0, %c0_i32, %c0_i32_0 : i32, i32, i32
  }
}

</mosaic_0001>

<llo_original>
// kernel: tpu_custom_call.1
$region0: #{tpu_custom_call.1}
  #allocation0 [shape = 'u32[]', space=smem, size = 0x4, offset = 0x4, fixed_abs, tag = 'smem constant byte address 0x4 - core index']
  #allocation1 [shape = 'u32[144,128]{1,0:T(1,128)}', space=vmem, size = 0x12000, scoped, tag = 'internal scratch']
  %s0 = inlined_call_operand.hbm [shape: bf16[2,8,32], index: 0, kind: input, shape index: {}]
  %s1 = inlined_call_operand.hbm [shape: bf16[32,96], index: 1, kind: input, shape index: {}]
  %s2 = inlined_call_operand.vmem [shape: f32[1,96], index: 2, kind: input, shape index: {}]
  %s3 = inlined_call_operand.hbm [shape: bf16[32,32], index: 3, kind: input, shape index: {}]
  %s4 = inlined_call_operand.vmem [shape: f32[1,32], index: 4, kind: input, shape index: {}]
  %s5 = inlined_call_operand.hbm [shape: f32[2,8,32], index: 5, kind: output, shape index: {}]
  %s6 = sld [smem:[#allocation0]]
  $region42: #{tpu_custom_call.1} parent=0
    _
  %s8 = ssub.s32 1, %s6
  %s9 = scalar_select 0, %s8, %s6
  $region1: #{tpu_custom_call.1} parent=0
    #allocation2 [shape = 'u8[4096]{0}', space=vmem, size = 0x1000, scoped, tag = 'input window, operand 0, single buffered']
    #allocation3 [shape = 's32[1]{0}', space=sflag, size = 0x4, scoped, tag = 'scoped memory for tpu_custom_call.1']
    #allocation4 [shape = 's32[1]{0}', space=sflag, size = 0x4, scoped, tag = 'scoped memory for tpu_custom_call.1']
    #allocation5 [shape = 'u8[8192]{0}', space=vmem, size = 0x2000, scoped, tag = 'input window, operand 1, single buffered']
    #allocation6 [shape = 's32[1]{0}', space=sflag, size = 0x4, scoped, tag = 'scoped memory for tpu_custom_call.1']
    #allocation7 [shape = 'u8[8192]{0}', space=vmem, size = 0x2000, scoped, tag = 'input window, operand 3, single buffered']
    #allocation8 [shape = 'u8[8192]{0}', space=vmem, size = 0x2000, scoped, tag = 'output window, operand 0, single buffered']
    %10 = vsyncpa [#allocation3], 0
    %11 = vsyncpa [#allocation6], 0
    %12 = vsyncpa [#allocation4], 0
    // Predicated region
    $region2: #{tpu_custom_call.1} parent=1 // pred_check
      _
    $region3: #{tpu_custom_call.1} parent=1 // pred_check_branch
      %14 = sbr.rel (0) target = $region5
    $region4: #{tpu_custom_call.1} parent=1 // pred_region
      %s16 = ssub.s32 128, 128
      %17 = vsyncadd [#allocation3], %s16
      %s18 = sshll.u32 [#allocation2], 4
      %s19 = int_to_ptr.vmem [resolvable:$true] %s18
      %24 = dma.hbm_to_vmem [thread:$0]  %s0, 128, %s19, [#allocation3], 64, 64, 4
    $region5: #{tpu_custom_call.1} parent=1 // pred_fallthru
      _
    // Predicated region
    $region6: #{tpu_custom_call.1} parent=1 // pred_check
      _
    $region7: #{tpu_custom_call.1} parent=1 // pred_check_branch
      %26 = sbr.rel (0) target = $region9
    $region8: #{tpu_custom_call.1} parent=1 // pred_region
      %s28 = ssub.s32 256, 256
      %29 = vsyncadd [#allocation6], %s28
      %s30 = sshll.u32 [#allocation5], 4
      %s31 = int_to_ptr.vmem [resolvable:$true] %s30
      %36 = dma.hbm_to_vmem [thread:$0]  %s1, 256, %s31, [#allocation6], 64, 64, 4
    $region9: #{tpu_custom_call.1} parent=1 // pred_fallthru
      _
    // Predicated region
    $region10: #{tpu_custom_call.1} parent=1 // pred_check
      _
    $region11: #{tpu_custom_call.1} parent=1 // pred_check_branch
      %38 = sbr.rel (0) target = $region13
    $region12: #{tpu_custom_call.1} parent=1 // pred_region
      _
    $region13: #{tpu_custom_call.1} parent=1 // pred_fallthru
      _
    // Predicated region
    $region14: #{tpu_custom_call.1} parent=1 // pred_check
      _
    $region15: #{tpu_custom_call.1} parent=1 // pred_check_branch
      %40 = sbr.rel (0) target = $region17
    $region16: #{tpu_custom_call.1} parent=1 // pred_region
      %s42 = ssub.s32 256, 256
      %43 = vsyncadd [#allocation6], %s42
      %s44 = sshll.u32 [#allocation7], 4
      %s45 = int_to_ptr.vmem [resolvable:$true] %s44
      %50 = dma.hbm_to_vmem [thread:$0]  %s3, 256, %s45, [#allocation6], 64, 64, 4
    $region17: #{tpu_custom_call.1} parent=1 // pred_fallthru
      _
    // Predicated region
    $region18: #{tpu_custom_call.1} parent=1 // pred_check
      _
    $region19: #{tpu_custom_call.1} parent=1 // pred_check_branch
      %52 = sbr.rel (0) target = $region21
    $region20: #{tpu_custom_call.1} parent=1 // pred_region
      _
    $region21: #{tpu_custom_call.1} parent=1 // pred_fallthru
      _
    // Predicated region
    $region22: #{tpu_custom_call.1} parent=1 // pred_check
      _
    $region23: #{tpu_custom_call.1} parent=1 // pred_check_branch
      %54 = sbr.rel (0) target = $region25
    $region24: #{tpu_custom_call.1} parent=1 // pred_region
      %55 = dma.done [#allocation3], 128
    $region25: #{tpu_custom_call.1} parent=1 // pred_fallthru
      _
    // Predicated region
    $region26: #{tpu_custom_call.1} parent=1 // pred_check
      _
    $region27: #{tpu_custom_call.1} parent=1 // pred_check_branch
      %57 = sbr.rel (0) target = $region29
    $region28: #{tpu_custom_call.1} parent=1 // pred_region
      %58 = dma.done [#allocation6], 256
    $region29: #{tpu_custom_call.1} parent=1 // pred_fallthru
      _
    // Predicated region
    $region30: #{tpu_custom_call.1} parent=1 // pred_check
      _
    $region31: #{tpu_custom_call.1} parent=1 // pred_check_branch
      %60 = sbr.rel (0) target = $region33
    $region32: #{tpu_custom_call.1} parent=1 // pred_region
      %61 = dma.done [#allocation6], 256
    $region33: #{tpu_custom_call.1} parent=1 // pred_fallthru
      _
    %v63 = vld [vmem:[#allocation2] sm:$0xf]
    %v64 = vld [vmem:[#allocation2 + $0x4] sm:$0xf]
    %v65 = vld [vmem:[#allocation5] sm:$0xf]
    %v66 = vld [vmem:[#allocation5 + $0x4] sm:$0xf]
    %v67 = vld [vmem:[#allocation5 + $0x8] sm:$0xf]
    %v68 = vld [vmem:[#allocation5 + $0xc] sm:$0xf]
    %v69 = vld [vmem:[%s2] sm:$0x1]
    %v71 = vlaneseq
    %v72 = vshrl.u32 %v71, 7
    %v73 = vsub.s32 0, %v72
    %v74 = vrot.slane %v69, %v73
    %v78 = vunpack.c.l.b16 %v63
    %v79 = vunpack.c.l.b16 %v64
    %v80 = vpack.c.b16 %v79, %v78
    %v85 = vunpack.c.l.b16 %v65
    %v86 = vunpack.c.l.b16 %v66
    %v87 = vunpack.c.l.b16 %v67
    %v88 = vunpack.c.l.b16 %v68
    %v89 = vpack.c.b16 %v86, %v85
    %v90 = vpack.c.b16 %v88, %v87
    %vm93 = vcmask 261120
    %v95 = vsel %vm93, %v80, 0
    %97 = vmatprep.subr.bf16.mxu0 0
    %98 = vmatpush1.bf16.msra.mxu0 %v89
    %99 = vmatprep.subr.bf16.mxu0 0
    %100 = vmatpush1.bf16.msra.mxu0 %v90
    %101 = vmatprep.subr.bf16.mxu0 0
    %102 = vmatpush1.bf16.msra.mxu0 0
    %103 = vmatprep.subr.bf16.mxu0 0
    %104 = vmatpush1.bf16.msra.mxu0 0
    %105 = vmatprep.subr.bf16.mxu0 0
    %106 = vmatpush1.bf16.msra.mxu0 0
    %107 = vmatprep.subr.bf16.mxu0 0
    %108 = vmatpush1.bf16.msra.mxu0 0
    %109 = vmatprep.subr.bf16.mxu0 0
    %110 = vmatpush1.bf16.msra.mxu0 0
    %111 = vmatprep.subr.bf16.mxu0 0
    %112 = vmatpush1.bf16.msra.mxu0 0
    %113 = vmatprep.subr.bf16.mxu0 0
    %114 = vmatpush1.bf16.msra.mxu0 0
    %115 = vmatprep.subr.bf16.mxu0 0
    %116 = vmatpush1.bf16.msra.mxu0 0
    %117 = vmatprep.subr.bf16.mxu0 0
    %118 = vmatpush1.bf16.msra.mxu0 0
    %119 = vmatprep.subr.bf16.mxu0 0
    %120 = vmatpush1.bf16.msra.mxu0 0
    %121 = vmatprep.subr.bf16.mxu0 0
    %122 = vmatpush1.bf16.msra.mxu0 0
    %123 = vmatprep.subr.bf16.mxu0 0
    %124 = vmatpush1.bf16.msra.mxu0 0
    %125 = vmatprep.subr.bf16.mxu0 0
    %126 = vmatpush1.bf16.msra.mxu0 0
    %127 = vmatprep.subr.bf16.mxu0 0
    %128 = vmatpush1.bf16.msra.mxu0 0
    %129 = vmatprep.mubr.bf16.mxu0 0
    %130 = vmatmul.mubr.bf16.gmra.mrb[0].mxu0 %v95
    %v131 = vpop.f32.mrb[0].mxu0
    %v132 = vadd.f32 %v74, %v131
    %v133 = vpop.f32.mrb[0].mxu0
    %v134 = vpop.f32.mrb[0].mxu0
    %v135 = vadd.f32 %v74, %v134
    %v136 = vpop.f32.mrb[0].mxu0
    %137 = vdwg.mxu0
    %v138 = vpack.c.bf16 %v135, %v132
    %140 = vrot.lane.b32.xlu0 %v138, 120
    %v141 = vpop.permute.xlu0 %140
    %142 = vrot.lane.b32.xlu0 %v138, 112
    %v143 = vpop.permute.xlu0 %142
    %144 = vrot.lane.b32.xlu0 %v138, 104
    %v145 = vpop.permute.xlu0 %144
    %v148 = vpack.i.b16 %v141, %v138
    %v150 = vshrl.u32 %v138, 16
    %v151 = vshrl.u32 %v141, 16
    %v152 = vpack.i.b16 %v151, %v150
    %v156 = vpack.i.b16 %v145, %v143
    %v158 = vshrl.u32 %v143, 16
    %v159 = vshrl.u32 %v145, 16
    %v160 = vpack.i.b16 %v159, %v158
    %v163 = vpack.i.b16 0, 0
    %v165 = vshrl.u32 0, 16
    %v166 = vpack.i.b16 %v165, %v165
    %v168 = vcombine.high %v148, %v163
    %v170 = vunpack.c.l.s4 1983009808
    %v171 = vunpack.c.0.s8 %v170
    %v172 = vlaneseq
    %v173 = vshrl.u32 %v172, 7
    %v174 = vsub.s32 %v171, %v173
    %v175 = vrot.slane %v148, %v174
    %v177 = vunpack.c.l.s4 1983009808
    %v178 = vunpack.c.0.s8 %v177
    %v179 = vlaneseq
    %v180 = vshrl.u32 %v179, 7
    %v181 = vsub.s32 %v178, %v180
    %v182 = vrot.slane %v168, %v181
    %v183 = vcombine.high %v156, %v163
    %v185 = vunpack.c.l.s4 1983009808
    %v186 = vunpack.c.0.s8 %v185
    %v187 = vlaneseq
    %v188 = vshrl.u32 %v187, 7
    %v189 = vsub.s32 %v186, %v188
    %v190 = vrot.slane %v156, %v189
    %v192 = vunpack.c.l.s4 1983009808
    %v193 = vunpack.c.0.s8 %v192
    %v194 = vlaneseq
    %v195 = vshrl.u32 %v194, 7
    %v196 = vsub.s32 %v193, %v195
    %v197 = vrot.slane %v183, %v196
    %v198 = vcombine.low %v175, %v190
    %v199 = vcombine.high %v175, %v190
    %v201 = vunpack.c.l.s4 1934713408
    %v202 = vunpack.c.0.s8 %v201
    %v203 = vlaneseq
    %v204 = vshrl.u32 %v203, 7
    %v205 = vsub.s32 %v202, %v204
    %v206 = vrot.slane %v198, %v205
    %v208 = vunpack.c.l.s4 1934713408
    %v209 = vunpack.c.0.s8 %v208
    %v210 = vlaneseq
    %v211 = vshrl.u32 %v210, 7
    %v212 = vsub.s32 %v209, %v211
    %v213 = vrot.slane %v199, %v212
    %v214 = vcombine.low %v182, %v197
    %v215 = vcombine.high %v182, %v197
    %v217 = vunpack.c.l.s4 1934713408
    %v218 = vunpack.c.0.s8 %v217
    %v219 = vlaneseq
    %v220 = vshrl.u32 %v219, 7
    %v221 = vsub.s32 %v218, %v220
    %v222 = vrot.slane %v214, %v221
    %v224 = vunpack.c.l.s4 1934713408
    %v225 = vunpack.c.0.s8 %v224
    %v226 = vlaneseq
    %v227 = vshrl.u32 %v226, 7
    %v228 = vsub.s32 %v225, %v227
    %v229 = vrot.slane %v215, %v228
    %v230 = vcombine.high %v206, 0
    %v231 = vcombine.high %v213, 0
    %v232 = vcombine.high %v222, 0
    %v233 = vcombine.high %v229, 0
    %v234 = vcombine.high %v152, %v166
    %v236 = vunpack.c.l.s4 1983009808
    %v237 = vunpack.c.0.s8 %v236
    %v238 = vlaneseq
    %v239 = vshrl.u32 %v238, 7
    %v240 = vsub.s32 %v237, %v239
    %v241 = vrot.slane %v152, %v240
    %v243 = vunpack.c.l.s4 1983009808
    %v244 = vunpack.c.0.s8 %v243
    %v245 = vlaneseq
    %v246 = vshrl.u32 %v245, 7
    %v247 = vsub.s32 %v244, %v246
    %v248 = vrot.slane %v234, %v247
    %v249 = vcombine.high %v160, %v166
    %v251 = vunpack.c.l.s4 1983009808
    %v252 = vunpack.c.0.s8 %v251
    %v253 = vlaneseq
    %v254 = vshrl.u32 %v253, 7
    %v255 = vsub.s32 %v252, %v254
    %v256 = vrot.slane %v160, %v255
    %v258 = vunpack.c.l.s4 1983009808
    %v259 = vunpack.c.0.s8 %v258
    %v260 = vlaneseq
    %v261 = vshrl.u32 %v260, 7
    %v262 = vsub.s32 %v259, %v261
    %v263 = vrot.slane %v249, %v262
    %v264 = vcombine.low %v241, %v256
    %v265 = vcombine.high %v241, %v256
    %v267 = vunpack.c.l.s4 1934713408
    %v268 = vunpack.c.0.s8 %v267
    %v269 = vlaneseq
    %v270 = vshrl.u32 %v269, 7
    %v271 = vsub.s32 %v268, %v270
    %v272 = vrot.slane %v264, %v271
    %v274 = vunpack.c.l.s4 1934713408
    %v275 = vunpack.c.0.s8 %v274
    %v276 = vlaneseq
    %v277 = vshrl.u32 %v276, 7
    %v278 = vsub.s32 %v275, %v277
    %v279 = vrot.slane %v265, %v278
    %v280 = vcombine.low %v248, %v263
    %v281 = vcombine.high %v248, %v263
    %v283 = vunpack.c.l.s4 1934713408
    %v284 = vunpack.c.0.s8 %v283
    %v285 = vlaneseq
    %v286 = vshrl.u32 %v285, 7
    %v287 = vsub.s32 %v284, %v286
    %v288 = vrot.slane %v280, %v287
    %v290 = vunpack.c.l.s4 1934713408
    %v291 = vunpack.c.0.s8 %v290
    %v292 = vlaneseq
    %v293 = vshrl.u32 %v292, 7
    %v294 = vsub.s32 %v291, %v293
    %v295 = vrot.slane %v281, %v294
    %v296 = vcombine.high %v272, 0
    %v297 = vcombine.high %v279, 0
    %v298 = vcombine.high %v288, 0
    %v299 = vcombine.high %v295, 0
    %v300 = vcombine.low %v206, %v213
    %v302 = vunpack.c.l.s4 1983009808
    %v303 = vunpack.c.0.s8 %v302
    %v304 = vlaneseq
    %v305 = vshrl.u32 %v304, 7
    %v306 = vsub.s32 %v303, %v305
    %v307 = vrot.slane %v300, %v306
    %v308 = vcombine.low %v230, %v231
    %v310 = vunpack.c.l.s4 1983009808
    %v311 = vunpack.c.0.s8 %v310
    %v312 = vlaneseq
    %v313 = vshrl.u32 %v312, 7
    %v314 = vsub.s32 %v311, %v313
    %v315 = vrot.slane %v308, %v314
    %v316 = vcombine.low %v307, %v315
    %v318 = vunpack.c.l.s4 1934713408
    %v319 = vunpack.c.0.s8 %v318
    %v320 = vlaneseq
    %v321 = vshrl.u32 %v320, 7
    %v322 = vsub.s32 %v319, %v321
    %v323 = vrot.slane %v316, %v322
    %v324 = vcombine.high %v323, 0
    %v325 = vcombine.low %v272, %v279
    %v327 = vunpack.c.l.s4 1983009808
    %v328 = vunpack.c.0.s8 %v327
    %v329 = vlaneseq
    %v330 = vshrl.u32 %v329, 7
    %v331 = vsub.s32 %v328, %v330
    %v332 = vrot.slane %v325, %v331
    %v333 = vcombine.low %v296, %v297
    %v335 = vunpack.c.l.s4 1983009808
    %v336 = vunpack.c.0.s8 %v335
    %v337 = vlaneseq
    %v338 = vshrl.u32 %v337, 7
    %v339 = vsub.s32 %v336, %v338
    %v340 = vrot.slane %v333, %v339
    %v341 = vcombine.low %v332, %v340
    %v343 = vunpack.c.l.s4 1934713408
    %v344 = vunpack.c.0.s8 %v343
    %v345 = vlaneseq
    %v346 = vshrl.u32 %v345, 7
    %v347 = vsub.s32 %v344, %v346
    %v348 = vrot.slane %v341, %v347
    %v349 = vcombine.high %v348, 0
    %v350 = vcombine.low %v222, %v229
    %v352 = vunpack.c.l.s4 1983009808
    %v353 = vunpack.c.0.s8 %v352
    %v354 = vlaneseq
    %v355 = vshrl.u32 %v354, 7
    %v356 = vsub.s32 %v353, %v355
    %v357 = vrot.slane %v350, %v356
    %v358 = vcombine.low %v232, %v233
    %v360 = vunpack.c.l.s4 1983009808
    %v361 = vunpack.c.0.s8 %v360
    %v362 = vlaneseq
    %v363 = vshrl.u32 %v362, 7
    %v364 = vsub.s32 %v361, %v363
    %v365 = vrot.slane %v358, %v364
    %v366 = vcombine.low %v357, %v365
    %v368 = vunpack.c.l.s4 1934713408
    %v369 = vunpack.c.0.s8 %v368
    %v370 = vlaneseq
    %v371 = vshrl.u32 %v370, 7
    %v372 = vsub.s32 %v369, %v371
    %v373 = vrot.slane %v366, %v372
    %v374 = vcombine.high %v373, 0
    %v375 = vcombine.low %v288, %v295
    %v377 = vunpack.c.l.s4 1983009808
    %v378 = vunpack.c.0.s8 %v377
    %v379 = vlaneseq
    %v380 = vshrl.u32 %v379, 7
    %v381 = vsub.s32 %v378, %v380
    %v382 = vrot.slane %v375, %v381
    %v383 = vcombine.low %v298, %v299
    %v385 = vunpack.c.l.s4 1983009808
    %v386 = vunpack.c.0.s8 %v385
    %v387 = vlaneseq
    %v388 = vshrl.u32 %v387, 7
    %v389 = vsub.s32 %v386, %v388
    %v390 = vrot.slane %v383, %v389
    %v391 = vcombine.low %v382, %v390
    %v393 = vunpack.c.l.s4 1934713408
    %v394 = vunpack.c.0.s8 %v393
    %v395 = vlaneseq
    %v396 = vshrl.u32 %v395, 7
    %v397 = vsub.s32 %v394, %v396
    %v398 = vrot.slane %v391, %v397
    %v399 = vcombine.high %v398, 0
    %v402 = vpack.i.b16 %v348, %v323
    %v403 = vshrl.u32 %v323, 16
    %v404 = vshrl.u32 %v348, 16
    %v405 = vpack.i.b16 %v404, %v403
    %v408 = vpack.i.b16 %v349, %v324
    %v409 = vshrl.u32 %v324, 16
    %v410 = vshrl.u32 %v349, 16
    %v411 = vpack.i.b16 %v410, %v409
    %v414 = vpack.i.b16 %v398, %v373
    %v415 = vshrl.u32 %v373, 16
    %v416 = vshrl.u32 %v398, 16
    %v417 = vpack.i.b16 %v416, %v415
    %v420 = vpack.i.b16 %v399, %v374
    %v421 = vshrl.u32 %v374, 16
    %v422 = vshrl.u32 %v399, 16
    %v423 = vpack.i.b16 %v422, %v421
    %424 = vrot.lane.b32.xlu0 %v138, 96
    %v425 = vpop.permute.xlu0 %424
    %426 = vrot.lane.b32.xlu0 %v141, 96
    %v427 = vpop.permute.xlu0 %426
    %428 = vrot.lane.b32.xlu0 %v143, 96
    %v429 = vpop.permute.xlu0 %428
    %430 = vrot.lane.b32.xlu0 %v145, 96
    %v431 = vpop.permute.xlu0 %430
    %v434 = vpack.i.b16 %v427, %v425
    %v436 = vshrl.u32 %v425, 16
    %v437 = vshrl.u32 %v427, 16
    %v438 = vpack.i.b16 %v437, %v436
    %v442 = vpack.i.b16 %v431, %v429
    %v444 = vshrl.u32 %v429, 16
    %v445 = vshrl.u32 %v431, 16
    %v446 = vpack.i.b16 %v445, %v444
    %v448 = vcombine.high %v434, %v163
    %v450 = vunpack.c.l.s4 1983009808
    %v451 = vunpack.c.0.s8 %v450
    %v452 = vlaneseq
    %v453 = vshrl.u32 %v452, 7
    %v454 = vsub.s32 %v451, %v453
    %v455 = vrot.slane %v434, %v454
    %v457 = vunpack.c.l.s4 1983009808
    %v458 = vunpack.c.0.s8 %v457
    %v459 = vlaneseq
    %v460 = vshrl.u32 %v459, 7
    %v461 = vsub.s32 %v458, %v460
    %v462 = vrot.slane %v448, %v461
    %v463 = vcombine.high %v442, %v163
    %v465 = vunpack.c.l.s4 1983009808
    %v466 = vunpack.c.0.s8 %v465
    %v467 = vlaneseq
    %v468 = vshrl.u32 %v467, 7
    %v469 = vsub.s32 %v466, %v468
    %v470 = vrot.slane %v442, %v469
    %v472 = vunpack.c.l.s4 1983009808
    %v473 = vunpack.c.0.s8 %v472
    %v474 = vlaneseq
    %v475 = vshrl.u32 %v474, 7
    %v476 = vsub.s32 %v473, %v475
    %v477 = vrot.slane %v463, %v476
    %v478 = vcombine.low %v455, %v470
    %v479 = vcombine.high %v455, %v470
    %v481 = vunpack.c.l.s4 1934713408
    %v482 = vunpack.c.0.s8 %v481
    %v483 = vlaneseq
    %v484 = vshrl.u32 %v483, 7
    %v485 = vsub.s32 %v482, %v484
    %v486 = vrot.slane %v478, %v485
    %v488 = vunpack.c.l.s4 1934713408
    %v489 = vunpack.c.0.s8 %v488
    %v490 = vlaneseq
    %v491 = vshrl.u32 %v490, 7
    %v492 = vsub.s32 %v489, %v491
    %v493 = vrot.slane %v479, %v492
    %v494 = vcombine.low %v462, %v477
    %v495 = vcombine.high %v462, %v477
    %v497 = vunpack.c.l.s4 1934713408
    %v498 = vunpack.c.0.s8 %v497
    %v499 = vlaneseq
    %v500 = vshrl.u32 %v499, 7
    %v501 = vsub.s32 %v498, %v500
    %v502 = vrot.slane %v494, %v501
    %v504 = vunpack.c.l.s4 1934713408
    %v505 = vunpack.c.0.s8 %v504
    %v506 = vlaneseq
    %v507 = vshrl.u32 %v506, 7
    %v508 = vsub.s32 %v505, %v507
    %v509 = vrot.slane %v495, %v508
    %v510 = vcombine.high %v486, 0
    %v511 = vcombine.high %v493, 0
    %v512 = vcombine.high %v502, 0
    %v513 = vcombine.high %v509, 0
    %v514 = vcombine.high %v438, %v166
    %v516 = vunpack.c.l.s4 1983009808
    %v517 = vunpack.c.0.s8 %v516
    %v518 = vlaneseq
    %v519 = vshrl.u32 %v518, 7
    %v520 = vsub.s32 %v517, %v519
    %v521 = vrot.slane %v438, %v520
    %v523 = vunpack.c.l.s4 1983009808
    %v524 = vunpack.c.0.s8 %v523
    %v525 = vlaneseq
    %v526 = vshrl.u32 %v525, 7
    %v527 = vsub.s32 %v524, %v526
    %v528 = vrot.slane %v514, %v527
    %v529 = vcombine.high %v446, %v166
    %v531 = vunpack.c.l.s4 1983009808
    %v532 = vunpack.c.0.s8 %v531
    %v533 = vlaneseq
    %v534 = vshrl.u32 %v533, 7
    %v535 = vsub.s32 %v532, %v534
    %v536 = vrot.slane %v446, %v535
    %v538 = vunpack.c.l.s4 1983009808
    %v539 = vunpack.c.0.s8 %v538
    %v540 = vlaneseq
    %v541 = vshrl.u32 %v540, 7
    %v542 = vsub.s32 %v539, %v541
    %v543 = vrot.slane %v529, %v542
    %v544 = vcombine.low %v521, %v536
    %v545 = vcombine.high %v521, %v536
    %v547 = vunpack.c.l.s4 1934713408
    %v548 = vunpack.c.0.s8 %v547
    %v549 = vlaneseq
    %v550 = vshrl.u32 %v549, 7
    %v551 = vsub.s32 %v548, %v550
    %v552 = vrot.slane %v544, %v551
    %v554 = vunpack.c.l.s4 1934713408
    %v555 = vunpack.c.0.s8 %v554
    %v556 = vlaneseq
    %v557 = vshrl.u32 %v556, 7
    %v558 = vsub.s32 %v555, %v557
    %v559 = vrot.slane %v545, %v558
    %v560 = vcombine.low %v528, %v543
    %v561 = vcombine.high %v528, %v543
    %v563 = vunpack.c.l.s4 1934713408
    %v564 = vunpack.c.0.s8 %v563
    %v565 = vlaneseq
    %v566 = vshrl.u32 %v565, 7
    %v567 = vsub.s32 %v564, %v566
    %v568 = vrot.slane %v560, %v567
    %v570 = vunpack.c.l.s4 1934713408
    %v571 = vunpack.c.0.s8 %v570
    %v572 = vlaneseq
    %v573 = vshrl.u32 %v572, 7
    %v574 = vsub.s32 %v571, %v573
    %v575 = vrot.slane %v561, %v574
    %v576 = vcombine.high %v552, 0
    %v577 = vcombine.high %v559, 0
    %v578 = vcombine.high %v568, 0
    %v579 = vcombine.high %v575, 0
    %580 = vxpose.xlu0.c.b16.start [1/8] %v486, 128
    %581 = vxpose.xlu0.c.b16.cont [2/8] 0, 128
    %582 = vxpose.xlu0.c.b16.cont [3/8] 0, 128
    %583 = vxpose.xlu0.c.b16.cont [4/8] 0, 128
    %584 = vxpose.xlu0.c.b16.cont [5/8] 0, 128
    %585 = vxpose.xlu0.c.b16.cont [6/8] 0, 128
    %586 = vxpose.xlu0.c.b16.cont [7/8] 0, 128
    %587 = vxpose.xlu0.c.b16.end [8/8] 0, 128
    %v588 = vpop.trf.xlu0
    %v589 = vpop.trf.xlu0
    %v590 = vpop.trf.xlu0
    %v591 = vpop.trf.xlu0
    %v592 = vpop.trf.xlu0
    %v593 = vpop.trf.xlu0
    %v594 = vpop.trf.xlu0
    %v595 = vpop.trf.xlu0
    %596 = vxpose.xlu0.c.b16.start [1/8] %v552, 128
    %597 = vxpose.xlu0.c.b16.cont [2/8] 0, 128
    %598 = vxpose.xlu0.c.b16.cont [3/8] 0, 128
    %599 = vxpose.xlu0.c.b16.cont [4/8] 0, 128
    %600 = vxpose.xlu0.c.b16.cont [5/8] 0, 128
    %601 = vxpose.xlu0.c.b16.cont [6/8] 0, 128
    %602 = vxpose.xlu0.c.b16.cont [7/8] 0, 128
    %603 = vxpose.xlu0.c.b16.end [8/8] 0, 128
    %v604 = vpop.trf.xlu0
    %v605 = vpop.trf.xlu0
    %v606 = vpop.trf.xlu0
    %v607 = vpop.trf.xlu0
    %v608 = vpop.trf.xlu0
    %v609 = vpop.trf.xlu0
    %v610 = vpop.trf.xlu0
    %v611 = vpop.trf.xlu0
    %612 = vxpose.xlu0.c.b16.start [1/8] %v510, 128
    %613 = vxpose.xlu0.c.b16.cont [2/8] 0, 128
    %614 = vxpose.xlu0.c.b16.cont [3/8] 0, 128
    %615 = vxpose.xlu0.c.b16.cont [4/8] 0, 128
    %616 = vxpose.xlu0.c.b16.cont [5/8] 0, 128
    %617 = vxpose.xlu0.c.b16.cont [6/8] 0, 128
    %618 = vxpose.xlu0.c.b16.cont [7/8] 0, 128
    %619 = vxpose.xlu0.c.b16.end [8/8] 0, 128
    %v620 = vpop.trf.xlu0
    %v621 = vpop.trf.xlu0
    %v622 = vpop.trf.xlu0
    %v623 = vpop.trf.xlu0
    %v624 = vpop.trf.xlu0
    %v625 = vpop.trf.xlu0
    %v626 = vpop.trf.xlu0
    %v627 = vpop.trf.xlu0
    %628 = vxpose.xlu0.c.b16.start [1/8] %v576, 128
    %629 = vxpose.xlu0.c.b16.cont [2/8] 0, 128
    %630 = vxpose.xlu0.c.b16.cont [3/8] 0, 128
    %631 = vxpose.xlu0.c.b16.cont [4/8] 0, 128
    %632 = vxpose.xlu0.c.b16.cont [5/8] 0, 128
    %633 = vxpose.xlu0.c.b16.cont [6/8] 0, 128
    %634 = vxpose.xlu0.c.b16.cont [7/8] 0, 128
    %635 = vxpose.xlu0.c.b16.end [8/8] 0, 128
    %v636 = vpop.trf.xlu0
    %v637 = vpop.trf.xlu0
    %v638 = vpop.trf.xlu0
    %v639 = vpop.trf.xlu0
    %v640 = vpop.trf.xlu0
    %v641 = vpop.trf.xlu0
    %v642 = vpop.trf.xlu0
    %v643 = vpop.trf.xlu0
    %644 = vxpose.xlu0.c.b16.start [1/8] %v493, 128
    %645 = vxpose.xlu0.c.b16.cont [2/8] 0, 128
    %646 = vxpose.xlu0.c.b16.cont [3/8] 0, 128
    %647 = vxpose.xlu0.c.b16.cont [4/8] 0, 128
    %648 = vxpose.xlu0.c.b16.cont [5/8] 0, 128
    %649 = vxpose.xlu0.c.b16.cont [6/8] 0, 128
    %650 = vxpose.xlu0.c.b16.cont [7/8] 0, 128
    %651 = vxpose.xlu0.c.b16.end [8/8] 0, 128
    %v652 = vpop.trf.xlu0
    %v653 = vpop.trf.xlu0
    %v654 = vpop.trf.xlu0
    %v655 = vpop.trf.xlu0
    %v656 = vpop.trf.xlu0
    %v657 = vpop.trf.xlu0
    %v658 = vpop.trf.xlu0
    %v659 = vpop.trf.xlu0
    %660 = vxpose.xlu0.c.b16.start [1/8] %v559, 128
    %661 = vxpose.xlu0.c.b16.cont [2/8] 0, 128
    %662 = vxpose.xlu0.c.b16.cont [3/8] 0, 128
    %663 = vxpose.xlu0.c.b16.cont [4/8] 0, 128
    %664 = vxpose.xlu0.c.b16.cont [5/8] 0, 128
    %665 = vxpose.xlu0.c.b16.cont [6/8] 0, 128
    %666 = vxpose.xlu0.c.b16.cont [7/8] 0, 128
    %667 = vxpose.xlu0.c.b16.end [8/8] 0, 128
    %v668 = vpop.trf.xlu0
    %v669 = vpop.trf.xlu0
    %v670 = vpop.trf.xlu0
    %v671 = vpop.trf.xlu0
    %v672 = vpop.trf.xlu0
    %v673 = vpop.trf.xlu0
    %v674 = vpop.trf.xlu0
    %v675 = vpop.trf.xlu0
    %676 = vxpose.xlu0.c.b16.start [1/8] %v511, 128
    %677 = vxpose.xlu0.c.b16.cont [2/8] 0, 128
    %678 = vxpose.xlu0.c.b16.cont [3/8] 0, 128
    %679 = vxpose.xlu0.c.b16.cont [4/8] 0, 128
    %680 = vxpose.xlu0.c.b16.cont [5/8] 0, 128
    %681 = vxpose.xlu0.c.b16.cont [6/8] 0, 128
    %682 = vxpose.xlu0.c.b16.cont [7/8] 0, 128
    %683 = vxpose.xlu0.c.b16.end [8/8] 0, 128
    %v684 = vpop.trf.xlu0
    %v685 = vpop.trf.xlu0
    %v686 = vpop.trf.xlu0
    %v687 = vpop.trf.xlu0
    %v688 = vpop.trf.xlu0
    %v689 = vpop.trf.xlu0
    %v690 = vpop.trf.xlu0
    %v691 = vpop.trf.xlu0
    %692 = vxpose.xlu0.c.b16.start [1/8] %v577, 128
    %693 = vxpose.xlu0.c.b16.cont [2/8] 0, 128
    %694 = vxpose.xlu0.c.b16.cont [3/8] 0, 128
    %695 = vxpose.xlu0.c.b16.cont [4/8] 0, 128
    %696 = vxpose.xlu0.c.b16.cont [5/8] 0, 128
    %697 = vxpose.xlu0.c.b16.cont [6/8] 0, 128
    %698 = vxpose.xlu0.c.b16.cont [7/8] 0, 128
    %699 = vxpose.xlu0.c.b16.end [8/8] 0, 128
    %v700 = vpop.trf.xlu0
    %v701 = vpop.trf.xlu0
    %v702 = vpop.trf.xlu0
    %v703 = vpop.trf.xlu0
    %v704 = vpop.trf.xlu0
    %v705 = vpop.trf.xlu0
    %v706 = vpop.trf.xlu0
    %v707 = vpop.trf.xlu0
    %708 = vxpose.xlu0.c.b16.start [1/8] %v502, 128
    %709 = vxpose.xlu0.c.b16.cont [2/8] 0, 128
    %710 = vxpose.xlu0.c.b16.cont [3/8] 0, 128
    %711 = vxpose.xlu0.c.b16.cont [4/8] 0, 128
    %712 = vxpose.xlu0.c.b16.cont [5/8] 0, 128
    %713 = vxpose.xlu0.c.b16.cont [6/8] 0, 128
    %714 = vxpose.xlu0.c.b16.cont [7/8] 0, 128
    %715 = vxpose.xlu0.c.b16.end [8/8] 0, 128
    %v716 = vpop.trf.xlu0
    %v717 = vpop.trf.xlu0
    %v718 = vpop.trf.xlu0
    %v719 = vpop.trf.xlu0
    %v720 = vpop.trf.xlu0
    %v721 = vpop.trf.xlu0
    %v722 = vpop.trf.xlu0
    %v723 = vpop.trf.xlu0
    %724 = vxpose.xlu0.c.b16.start [1/8] %v568, 128
    %725 = vxpose.xlu0.c.b16.cont [2/8] 0, 128
    %726 = vxpose.xlu0.c.b16.cont [3/8] 0, 128
    %727 = vxpose.xlu0.c.b16.cont [4/8] 0, 128
    %728 = vxpose.xlu0.c.b16.cont [5/8] 0, 128
    %729 = vxpose.xlu0.c.b16.cont [6/8] 0, 128
    %730 = vxpose.xlu0.c.b16.cont [7/8] 0, 128
    %731 = vxpose.xlu0.c.b16.end [8/8] 0, 128
    %v732 = vpop.trf.xlu0
    %v733 = vpop.trf.xlu0
    %v734 = vpop.trf.xlu0
    %v735 = vpop.trf.xlu0
    %v736 = vpop.trf.xlu0
    %v737 = vpop.trf.xlu0
    %v738 = vpop.trf.xlu0
    %v739 = vpop.trf.xlu0
    %740 = vxpose.xlu0.c.b16.start [1/8] %v512, 128
    %741 = vxpose.xlu0.c.b16.cont [2/8] 0, 128
    %742 = vxpose.xlu0.c.b16.cont [3/8] 0, 128
    %743 = vxpose.xlu0.c.b16.cont [4/8] 0, 128
    %744 = vxpose.xlu0.c.b16.cont [5/8] 0, 128
    %745 = vxpose.xlu0.c.b16.cont [6/8] 0, 128
    %746 = vxpose.xlu0.c.b16.cont [7/8] 0, 128
    %747 = vxpose.xlu0.c.b16.end [8/8] 0, 128
    %v748 = vpop.trf.xlu0
    %v749 = vpop.trf.xlu0
    %v750 = vpop.trf.xlu0
    %v751 = vpop.trf.xlu0
    %v752 = vpop.trf.xlu0
    %v753 = vpop.trf.xlu0
    %v754 = vpop.trf.xlu0
    %v755 = vpop.trf.xlu0
    %756 = vxpose.xlu0.c.b16.start [1/8] %v578, 128
    %757 = vxpose.xlu0.c.b16.cont [2/8] 0, 128
    %758 = vxpose.xlu0.c.b16.cont [3/8] 0, 128
    %759 = vxpose.xlu0.c.b16.cont [4/8] 0, 128
    %760 = vxpose.xlu0.c.b16.cont [5/8] 0, 128
    %761 = vxpose.xlu0.c.b16.cont [6/8] 0, 128
    %762 = vxpose.xlu0.c.b16.cont [7/8] 0, 128
    %763 = vxpose.xlu0.c.b16.end [8/8] 0, 128
    %v764 = vpop.trf.xlu0
    %v765 = vpop.trf.xlu0
    %v766 = vpop.trf.xlu0
    %v767 = vpop.trf.xlu0
    %v768 = vpop.trf.xlu0
    %v769 = vpop.trf.xlu0
    %v770 = vpop.trf.xlu0
    %v771 = vpop.trf.xlu0
    %772 = vxpose.xlu0.c.b16.start [1/8] %v509, 128
    %773 = vxpose.xlu0.c.b16.cont [2/8] 0, 128
    %774 = vxpose.xlu0.c.b16.cont [3/8] 0, 128
    %775 = vxpose.xlu0.c.b16.cont [4/8] 0, 128
    %776 = vxpose.xlu0.c.b16.cont [5/8] 0, 128
    %777 = vxpose.xlu0.c.b16.cont [6/8] 0, 128
    %778 = vxpose.xlu0.c.b16.cont [7/8] 0, 128
    %779 = vxpose.xlu0.c.b16.end [8/8] 0, 128
    %v780 = vpop.trf.xlu0
    %v781 = vpop.trf.xlu0
    %v782 = vpop.trf.xlu0
    %v783 = vpop.trf.xlu0
    %v784 = vpop.trf.xlu0
    %v785 = vpop.trf.xlu0
    %v786 = vpop.trf.xlu0
    %v787 = vpop.trf.xlu0
    %788 = vxpose.xlu0.c.b16.start [1/8] %v575, 128
    %789 = vxpose.xlu0.c.b16.cont [2/8] 0, 128
    %790 = vxpose.xlu0.c.b16.cont [3/8] 0, 128
    %791 = vxpose.xlu0.c.b16.cont [4/8] 0, 128
    %792 = vxpose.xlu0.c.b16.cont [5/8] 0, 128
    %793 = vxpose.xlu0.c.b16.cont [6/8] 0, 128
    %794 = vxpose.xlu0.c.b16.cont [7/8] 0, 128
    %795 = vxpose.xlu0.c.b16.end [8/8] 0, 128
    %v796 = vpop.trf.xlu0
    %v797 = vpop.trf.xlu0
    %v798 = vpop.trf.xlu0
    %v799 = vpop.trf.xlu0
    %v800 = vpop.trf.xlu0
    %v801 = vpop.trf.xlu0
    %v802 = vpop.trf.xlu0
    %v803 = vpop.trf.xlu0
    %804 = vxpose.xlu0.c.b16.start [1/8] %v513, 128
    %805 = vxpose.xlu0.c.b16.cont [2/8] 0, 128
    %806 = vxpose.xlu0.c.b16.cont [3/8] 0, 128
    %807 = vxpose.xlu0.c.b16.cont [4/8] 0, 128
    %808 = vxpose.xlu0.c.b16.cont [5/8] 0, 128
    %809 = vxpose.xlu0.c.b16.cont [6/8] 0, 128
    %810 = vxpose.xlu0.c.b16.cont [7/8] 0, 128
    %811 = vxpose.xlu0.c.b16.end [8/8] 0, 128
    %v812 = vpop.trf.xlu0
    %v813 = vpop.trf.xlu0
    %v814 = vpop.trf.xlu0
    %v815 = vpop.trf.xlu0
    %v816 = vpop.trf.xlu0
    %v817 = vpop.trf.xlu0
    %v818 = vpop.trf.xlu0
    %v819 = vpop.trf.xlu0
    %820 = vxpose.xlu0.c.b16.start [1/8] %v579, 128
    %821 = vxpose.xlu0.c.b16.cont [2/8] 0, 128
    %822 = vxpose.xlu0.c.b16.cont [3/8] 0, 128
    %823 = vxpose.xlu0.c.b16.cont [4/8] 0, 128
    %824 = vxpose.xlu0.c.b16.cont [5/8] 0, 128
    %825 = vxpose.xlu0.c.b16.cont [6/8] 0, 128
    %826 = vxpose.xlu0.c.b16.cont [7/8] 0, 128
    %827 = vxpose.xlu0.c.b16.end [8/8] 0, 128
    %v828 = vpop.trf.xlu0
    %v829 = vpop.trf.xlu0
    %v830 = vpop.trf.xlu0
    %v831 = vpop.trf.xlu0
    %v832 = vpop.trf.xlu0
    %v833 = vpop.trf.xlu0
    %v834 = vpop.trf.xlu0
    %v835 = vpop.trf.xlu0
    %v836 = vcombine.low %v588, %v652
    %v838 = vunpack.c.l.s4 1983009808
    %v839 = vunpack.c.0.s8 %v838
    %v840 = vlaneseq
    %v841 = vshrl.u32 %v840, 7
    %v842 = vsub.s32 %v839, %v841
    %v843 = vrot.slane %v836, %v842
    %v844 = vcombine.low %v620, %v684
    %v846 = vunpack.c.l.s4 1983009808
    %v847 = vunpack.c.0.s8 %v846
    %v848 = vlaneseq
    %v849 = vshrl.u32 %v848, 7
    %v850 = vsub.s32 %v847, %v849
    %v851 = vrot.slane %v844, %v850
    %v852 = vcombine.low %v843, %v851
    %v853 = vcombine.high %v843, %v851
    %v855 = vunpack.c.l.s4 1934713408
    %v856 = vunpack.c.0.s8 %v855
    %v857 = vlaneseq
    %v858 = vshrl.u32 %v857, 7
    %v859 = vsub.s32 %v856, %v858
    %v860 = vrot.slane %v852, %v859
    %v862 = vunpack.c.l.s4 1934713408
    %v863 = vunpack.c.0.s8 %v862
    %v864 = vlaneseq
    %v865 = vshrl.u32 %v864, 7
    %v866 = vsub.s32 %v863, %v865
    %v867 = vrot.slane %v853, %v866
    %v868 = vcombine.high %v860, 0
    %v869 = vcombine.high %v867, 0
    %v870 = vcombine.low %v604, %v668
    %v872 = vunpack.c.l.s4 1983009808
    %v873 = vunpack.c.0.s8 %v872
    %v874 = vlaneseq
    %v875 = vshrl.u32 %v874, 7
    %v876 = vsub.s32 %v873, %v875
    %v877 = vrot.slane %v870, %v876
    %v878 = vcombine.low %v636, %v700
    %v880 = vunpack.c.l.s4 1983009808
    %v881 = vunpack.c.0.s8 %v880
    %v882 = vlaneseq
    %v883 = vshrl.u32 %v882, 7
    %v884 = vsub.s32 %v881, %v883
    %v885 = vrot.slane %v878, %v884
    %v886 = vcombine.low %v877, %v885
    %v887 = vcombine.high %v877, %v885
    %v889 = vunpack.c.l.s4 1934713408
    %v890 = vunpack.c.0.s8 %v889
    %v891 = vlaneseq
    %v892 = vshrl.u32 %v891, 7
    %v893 = vsub.s32 %v890, %v892
    %v894 = vrot.slane %v886, %v893
    %v896 = vunpack.c.l.s4 1934713408
    %v897 = vunpack.c.0.s8 %v896
    %v898 = vlaneseq
    %v899 = vshrl.u32 %v898, 7
    %v900 = vsub.s32 %v897, %v899
    %v901 = vrot.slane %v887, %v900
    %v902 = vcombine.high %v894, 0
    %v903 = vcombine.high %v901, 0
    %v904 = vcombine.low %v716, %v780
    %v906 = vunpack.c.l.s4 1983009808
    %v907 = vunpack.c.0.s8 %v906
    %v908 = vlaneseq
    %v909 = vshrl.u32 %v908, 7
    %v910 = vsub.s32 %v907, %v909
    %v911 = vrot.slane %v904, %v910
    %v912 = vcombine.low %v748, %v812
    %v914 = vunpack.c.l.s4 1983009808
    %v915 = vunpack.c.0.s8 %v914
    %v916 = vlaneseq
    %v917 = vshrl.u32 %v916, 7
    %v918 = vsub.s32 %v915, %v917
    %v919 = vrot.slane %v912, %v918
    %v920 = vcombine.low %v911, %v919
    %v921 = vcombine.high %v911, %v919
    %v923 = vunpack.c.l.s4 1934713408
    %v924 = vunpack.c.0.s8 %v923
    %v925 = vlaneseq
    %v926 = vshrl.u32 %v925, 7
    %v927 = vsub.s32 %v924, %v926
    %v928 = vrot.slane %v920, %v927
    %v930 = vunpack.c.l.s4 1934713408
    %v931 = vunpack.c.0.s8 %v930
    %v932 = vlaneseq
    %v933 = vshrl.u32 %v932, 7
    %v934 = vsub.s32 %v931, %v933
    %v935 = vrot.slane %v921, %v934
    %v936 = vcombine.high %v928, 0
    %v937 = vcombine.high %v935, 0
    %v938 = vcombine.low %v732, %v796
    %v940 = vunpack.c.l.s4 1983009808
    %v941 = vunpack.c.0.s8 %v940
    %v942 = vlaneseq
    %v943 = vshrl.u32 %v942, 7
    %v944 = vsub.s32 %v941, %v943
    %v945 = vrot.slane %v938, %v944
    %v946 = vcombine.low %v764, %v828
    %v948 = vunpack.c.l.s4 1983009808
    %v949 = vunpack.c.0.s8 %v948
    %v950 = vlaneseq
    %v951 = vshrl.u32 %v950, 7
    %v952 = vsub.s32 %v949, %v951
    %v953 = vrot.slane %v946, %v952
    %v954 = vcombine.low %v945, %v953
    %v955 = vcombine.high %v945, %v953
    %v957 = vunpack.c.l.s4 1934713408
    %v958 = vunpack.c.0.s8 %v957
    %v959 = vlaneseq
    %v960 = vshrl.u32 %v959, 7
    %v961 = vsub.s32 %v958, %v960
    %v962 = vrot.slane %v954, %v961
    %v964 = vunpack.c.l.s4 1934713408
    %v965 = vunpack.c.0.s8 %v964
    %v966 = vlaneseq
    %v967 = vshrl.u32 %v966, 7
    %v968 = vsub.s32 %v965, %v967
    %v969 = vrot.slane %v955, %v968
    %v970 = vcombine.high %v962, 0
    %v971 = vcombine.high %v969, 0
    %v974 = vpack.i.b16 %v894, %v860
    %v976 = vshrl.u32 %v860, 16
    %v977 = vshrl.u32 %v894, 16
    %v978 = vpack.i.b16 %v977, %v976
    %v982 = vpack.i.b16 %v902, %v868
    %v984 = vshrl.u32 %v868, 16
    %v985 = vshrl.u32 %v902, 16
    %v986 = vpack.i.b16 %v985, %v984
    %v990 = vpack.i.b16 %v901, %v867
    %v992 = vshrl.u32 %v867, 16
    %v993 = vshrl.u32 %v901, 16
    %v994 = vpack.i.b16 %v993, %v992
    %v998 = vpack.i.b16 %v903, %v869
    %v1000 = vshrl.u32 %v869, 16
    %v1001 = vshrl.u32 %v903, 16
    %v1002 = vpack.i.b16 %v1001, %v1000
    %v1006 = vpack.i.b16 %v962, %v928
    %v1008 = vshrl.u32 %v928, 16
    %v1009 = vshrl.u32 %v962, 16
    %v1010 = vpack.i.b16 %v1009, %v1008
    %v1014 = vpack.i.b16 %v970, %v936
    %v1016 = vshrl.u32 %v936, 16
    %v1017 = vshrl.u32 %v970, 16
    %v1018 = vpack.i.b16 %v1017, %v1016
    %v1022 = vpack.i.b16 %v969, %v935
    %v1024 = vshrl.u32 %v935, 16
    %v1025 = vshrl.u32 %v969, 16
    %v1026 = vpack.i.b16 %v1025, %v1024
    %v1030 = vpack.i.b16 %v971, %v937
    %v1032 = vshrl.u32 %v937, 16
    %v1033 = vshrl.u32 %v971, 16
    %v1034 = vpack.i.b16 %v1033, %v1032
    %1036 = vxpose.xlu0.c.b16.start [1/8] %v974, 128
    %1037 = vxpose.xlu0.c.b16.cont [2/8] 0, 128
    %1038 = vxpose.xlu0.c.b16.cont [3/8] 0, 128
    %1039 = vxpose.xlu0.c.b16.cont [4/8] 0, 128
    %1040 = vxpose.xlu0.c.b16.cont [5/8] 0, 128
    %1041 = vxpose.xlu0.c.b16.cont [6/8] 0, 128
    %1042 = vxpose.xlu0.c.b16.cont [7/8] 0, 128
    %1043 = vxpose.xlu0.c.b16.end [8/8] 0, 128
    %v1044 = vpop.trf.xlu0
    %v1045 = vpop.trf.xlu0
    %v1046 = vpop.trf.xlu0
    %v1047 = vpop.trf.xlu0
    %v1048 = vpop.trf.xlu0
    %v1049 = vpop.trf.xlu0
    %v1050 = vpop.trf.xlu0
    %v1051 = vpop.trf.xlu0
    %1052 = vxpose.xlu0.c.b16.start [1/8] %v978, 128
    %1053 = vxpose.xlu0.c.b16.cont [2/8] 0, 128
    %1054 = vxpose.xlu0.c.b16.cont [3/8] 0, 128
    %1055 = vxpose.xlu0.c.b16.cont [4/8] 0, 128
    %1056 = vxpose.xlu0.c.b16.cont [5/8] 0, 128
    %1057 = vxpose.xlu0.c.b16.cont [6/8] 0, 128
    %1058 = vxpose.xlu0.c.b16.cont [7/8] 0, 128
    %1059 = vxpose.xlu0.c.b16.end [8/8] 0, 128
    %v1060 = vpop.trf.xlu0
    %v1061 = vpop.trf.xlu0
    %v1062 = vpop.trf.xlu0
    %v1063 = vpop.trf.xlu0
    %v1064 = vpop.trf.xlu0
    %v1065 = vpop.trf.xlu0
    %v1066 = vpop.trf.xlu0
    %v1067 = vpop.trf.xlu0
    %1068 = vxpose.xlu0.c.b16.start [1/8] %v982, 128
    %1069 = vxpose.xlu0.c.b16.cont [2/8] 0, 128
    %1070 = vxpose.xlu0.c.b16.cont [3/8] 0, 128
    %1071 = vxpose.xlu0.c.b16.cont [4/8] 0, 128
    %1072 = vxpose.xlu0.c.b16.cont [5/8] 0, 128
    %1073 = vxpose.xlu0.c.b16.cont [6/8] 0, 128
    %1074 = vxpose.xlu0.c.b16.cont [7/8] 0, 128
    %1075 = vxpose.xlu0.c.b16.end [8/8] 0, 128
    %v1076 = vpop.trf.xlu0
    %v1077 = vpop.trf.xlu0
    %v1078 = vpop.trf.xlu0
    %v1079 = vpop.trf.xlu0
    %v1080 = vpop.trf.xlu0
    %v1081 = vpop.trf.xlu0
    %v1082 = vpop.trf.xlu0
    %v1083 = vpop.trf.xlu0
    %1084 = vxpose.xlu0.c.b16.start [1/8] %v986, 128
    %1085 = vxpose.xlu0.c.b16.cont [2/8] 0, 128
    %1086 = vxpose.xlu0.c.b16.cont [3/8] 0, 128
    %1087 = vxpose.xlu0.c.b16.cont [4/8] 0, 128
    %1088 = vxpose.xlu0.c.b16.cont [5/8] 0, 128
    %1089 = vxpose.xlu0.c.b16.cont [6/8] 0, 128
    %1090 = vxpose.xlu0.c.b16.cont [7/8] 0, 128
    %1091 = vxpose.xlu0.c.b16.end [8/8] 0, 128
    %v1092 = vpop.trf.xlu0
    %v1093 = vpop.trf.xlu0
    %v1094 = vpop.trf.xlu0
    %v1095 = vpop.trf.xlu0
    %v1096 = vpop.trf.xlu0
    %v1097 = vpop.trf.xlu0
    %v1098 = vpop.trf.xlu0
    %v1099 = vpop.trf.xlu0
    %1100 = vxpose.xlu0.c.b16.start [1/8] %v990, 128
    %1101 = vxpose.xlu0.c.b16.cont [2/8] 0, 128
    %1102 = vxpose.xlu0.c.b16.cont [3/8] 0, 128
    %1103 = vxpose.xlu0.c.b16.cont [4/8] 0, 128
    %1104 = vxpose.xlu0.c.b16.cont [5/8] 0, 128
    %1105 = vxpose.xlu0.c.b16.cont [6/8] 0, 128
    %1106 = vxpose.xlu0.c.b16.cont [7/8] 0, 128
    %1107 = vxpose.xlu0.c.b16.end [8/8] 0, 128
    %v1108 = vpop.trf.xlu0
    %v1109 = vpop.trf.xlu0
    %v1110 = vpop.trf.xlu0
    %v1111 = vpop.trf.xlu0
    %v1112 = vpop.trf.xlu0
    %v1113 = vpop.trf.xlu0
    %v1114 = vpop.trf.xlu0
    %v1115 = vpop.trf.xlu0
    %1116 = vxpose.xlu0.c.b16.start [1/8] %v994, 128
    %1117 = vxpose.xlu0.c.b16.cont [2/8] 0, 128
    %1118 = vxpose.xlu0.c.b16.cont [3/8] 0, 128
    %1119 = vxpose.xlu0.c.b16.cont [4/8] 0, 128
    %1120 = vxpose.xlu0.c.b16.cont [5/8] 0, 128
    %1121 = vxpose.xlu0.c.b16.cont [6/8] 0, 128
    %1122 = vxpose.xlu0.c.b16.cont [7/8] 0, 128
    %1123 = vxpose.xlu0.c.b16.end [8/8] 0, 128
    %v1124 = vpop.trf.xlu0
    %v1125 = vpop.trf.xlu0
    %v1126 = vpop.trf.xlu0
    %v1127 = vpop.trf.xlu0
    %v1128 = vpop.trf.xlu0
    %v1129 = vpop.trf.xlu0
    %v1130 = vpop.trf.xlu0
    %v1131 = vpop.trf.xlu0
    %1132 = vxpose.xlu0.c.b16.start [1/8] %v998, 128
    %1133 = vxpose.xlu0.c.b16.cont [2/8] 0, 128
    %1134 = vxpose.xlu0.c.b16.cont [3/8] 0, 128
    %1135 = vxpose.xlu0.c.b16.cont [4/8] 0, 128
    %1136 = vxpose.xlu0.c.b16.cont [5/8] 0, 128
    %1137 = vxpose.xlu0.c.b16.cont [6/8] 0, 128
    %1138 = vxpose.xlu0.c.b16.cont [7/8] 0, 128
    %1139 = vxpose.xlu0.c.b16.end [8/8] 0, 128
    %v1140 = vpop.trf.xlu0
    %v1141 = vpop.trf.xlu0
    %v1142 = vpop.trf.xlu0
    %v1143 = vpop.trf.xlu0
    %v1144 = vpop.trf.xlu0
    %v1145 = vpop.trf.xlu0
    %v1146 = vpop.trf.xlu0
    %v1147 = vpop.trf.xlu0
    %1148 = vxpose.xlu0.c.b16.start [1/8] %v1002, 128
    %1149 = vxpose.xlu0.c.b16.cont [2/8] 0, 128
    %1150 = vxpose.xlu0.c.b16.cont [3/8] 0, 128
    %1151 = vxpose.xlu0.c.b16.cont [4/8] 0, 128
    %1152 = vxpose.xlu0.c.b16.cont [5/8] 0, 128
    %1153 = vxpose.xlu0.c.b16.cont [6/8] 0, 128
    %1154 = vxpose.xlu0.c.b16.cont [7/8] 0, 128
    %1155 = vxpose.xlu0.c.b16.end [8/8] 0, 128
    %v1156 = vpop.trf.xlu0
    %v1157 = vpop.trf.xlu0
    %v1158 = vpop.trf.xlu0
    %v1159 = vpop.trf.xlu0
    %v1160 = vpop.trf.xlu0
    %v1161 = vpop.trf.xlu0
    %v1162 = vpop.trf.xlu0
    %v1163 = vpop.trf.xlu0
    %1164 = vxpose.xlu0.c.b16.start [1/8] %v1006, 128
    %1165 = vxpose.xlu0.c.b16.cont [2/8] 0, 128
    %1166 = vxpose.xlu0.c.b16.cont [3/8] 0, 128
    %1167 = vxpose.xlu0.c.b16.cont [4/8] 0, 128
    %1168 = vxpose.xlu0.c.b16.cont [5/8] 0, 128
    %1169 = vxpose.xlu0.c.b16.cont [6/8] 0, 128
    %1170 = vxpose.xlu0.c.b16.cont [7/8] 0, 128
    %1171 = vxpose.xlu0.c.b16.end [8/8] 0, 128
    %v1172 = vpop.trf.xlu0
    %v1173 = vpop.trf.xlu0
    %v1174 = vpop.trf.xlu0
    %v1175 = vpop.trf.xlu0
    %v1176 = vpop.trf.xlu0
    %v1177 = vpop.trf.xlu0
    %v1178 = vpop.trf.xlu0
    %v1179 = vpop.trf.xlu0
    %1180 = vxpose.xlu0.c.b16.start [1/8] %v1010, 128
    %1181 = vxpose.xlu0.c.b16.cont [2/8] 0, 128
    %1182 = vxpose.xlu0.c.b16.cont [3/8] 0, 128
    %1183 = vxpose.xlu0.c.b16.cont [4/8] 0, 128
    %1184 = vxpose.xlu0.c.b16.cont [5/8] 0, 128
    %1185 = vxpose.xlu0.c.b16.cont [6/8] 0, 128
    %1186 = vxpose.xlu0.c.b16.cont [7/8] 0, 128
    %1187 = vxpose.xlu0.c.b16.end [8/8] 0, 128
    %v1188 = vpop.trf.xlu0
    %v1189 = vpop.trf.xlu0
    %v1190 = vpop.trf.xlu0
    %v1191 = vpop.trf.xlu0
    %v1192 = vpop.trf.xlu0
    %v1193 = vpop.trf.xlu0
    %v1194 = vpop.trf.xlu0
    %v1195 = vpop.trf.xlu0
    %1196 = vxpose.xlu0.c.b16.start [1/8] %v1014, 128
    %1197 = vxpose.xlu0.c.b16.cont [2/8] 0, 128
    %1198 = vxpose.xlu0.c.b16.cont [3/8] 0, 128
    %1199 = vxpose.xlu0.c.b16.cont [4/8] 0, 128
    %1200 = vxpose.xlu0.c.b16.cont [5/8] 0, 128
    %1201 = vxpose.xlu0.c.b16.cont [6/8] 0, 128
    %1202 = vxpose.xlu0.c.b16.cont [7/8] 0, 128
    %1203 = vxpose.xlu0.c.b16.end [8/8] 0, 128
    %v1204 = vpop.trf.xlu0
    %v1205 = vpop.trf.xlu0
    %v1206 = vpop.trf.xlu0
    %v1207 = vpop.trf.xlu0
    %v1208 = vpop.trf.xlu0
    %v1209 = vpop.trf.xlu0
    %v1210 = vpop.trf.xlu0
    %v1211 = vpop.trf.xlu0
    %1212 = vxpose.xlu0.c.b16.start [1/8] %v1018, 128
    %1213 = vxpose.xlu0.c.b16.cont [2/8] 0, 128
    %1214 = vxpose.xlu0.c.b16.cont [3/8] 0, 128
    %1215 = vxpose.xlu0.c.b16.cont [4/8] 0, 128
    %1216 = vxpose.xlu0.c.b16.cont [5/8] 0, 128
    %1217 = vxpose.xlu0.c.b16.cont [6/8] 0, 128
    %1218 = vxpose.xlu0.c.b16.cont [7/8] 0, 128
    %1219 = vxpose.xlu0.c.b16.end [8/8] 0, 128
    %v1220 = vpop.trf.xlu0
    %v1221 = vpop.trf.xlu0
    %v1222 = vpop.trf.xlu0
    %v1223 = vpop.trf.xlu0
    %v1224 = vpop.trf.xlu0
    %v1225 = vpop.trf.xlu0
    %v1226 = vpop.trf.xlu0
    %v1227 = vpop.trf.xlu0
    %1228 = vxpose.xlu0.c.b16.start [1/8] %v1022, 128
    %1229 = vxpose.xlu0.c.b16.cont [2/8] 0, 128
    %1230 = vxpose.xlu0.c.b16.cont [3/8] 0, 128
    %1231 = vxpose.xlu0.c.b16.cont [4/8] 0, 128
    %1232 = vxpose.xlu0.c.b16.cont [5/8] 0, 128
    %1233 = vxpose.xlu0.c.b16.cont [6/8] 0, 128
    %1234 = vxpose.xlu0.c.b16.cont [7/8] 0, 128
    %1235 = vxpose.xlu0.c.b16.end [8/8] 0, 128
    %v1236 = vpop.trf.xlu0
    %v1237 = vpop.trf.xlu0
    %v1238 = vpop.trf.xlu0
    %v1239 = vpop.trf.xlu0
    %v1240 = vpop.trf.xlu0
    %v1241 = vpop.trf.xlu0
    %v1242 = vpop.trf.xlu0
    %v1243 = vpop.trf.xlu0
    %1244 = vxpose.xlu0.c.b16.start [1/8] %v1026, 128
    %1245 = vxpose.xlu0.c.b16.cont [2/8] 0, 128
    %1246 = vxpose.xlu0.c.b16.cont [3/8] 0, 128
    %1247 = vxpose.xlu0.c.b16.cont [4/8] 0, 128
    %1248 = vxpose.xlu0.c.b16.cont [5/8] 0, 128
    %1249 = vxpose.xlu0.c.b16.cont [6/8] 0, 128
    %1250 = vxpose.xlu0.c.b16.cont [7/8] 0, 128
    %1251 = vxpose.xlu0.c.b16.end [8/8] 0, 128
    %v1252 = vpop.trf.xlu0
    %v1253 = vpop.trf.xlu0
    %v1254 = vpop.trf.xlu0
    %v1255 = vpop.trf.xlu0
    %v1256 = vpop.trf.xlu0
    %v1257 = vpop.trf.xlu0
    %v1258 = vpop.trf.xlu0
    %v1259 = vpop.trf.xlu0
    %1260 = vxpose.xlu0.c.b16.start [1/8] %v1030, 128
    %1261 = vxpose.xlu0.c.b16.cont [2/8] 0, 128
    %1262 = vxpose.xlu0.c.b16.cont [3/8] 0, 128
    %1263 = vxpose.xlu0.c.b16.cont [4/8] 0, 128
    %1264 = vxpose.xlu0.c.b16.cont [5/8] 0, 128
    %1265 = vxpose.xlu0.c.b16.cont [6/8] 0, 128
    %1266 = vxpose.xlu0.c.b16.cont [7/8] 0, 128
    %1267 = vxpose.xlu0.c.b16.end [8/8] 0, 128
    %v1268 = vpop.trf.xlu0
    %v1269 = vpop.trf.xlu0
    %v1270 = vpop.trf.xlu0
    %v1271 = vpop.trf.xlu0
    %v1272 = vpop.trf.xlu0
    %v1273 = vpop.trf.xlu0
    %v1274 = vpop.trf.xlu0
    %v1275 = vpop.trf.xlu0
    %1276 = vxpose.xlu0.c.b16.start [1/8] %v1034, 128
    %1277 = vxpose.xlu0.c.b16.cont [2/8] 0, 128
    %1278 = vxpose.xlu0.c.b16.cont [3/8] 0, 128
    %1279 = vxpose.xlu0.c.b16.cont [4/8] 0, 128
    %1280 = vxpose.xlu0.c.b16.cont [5/8] 0, 128
    %1281 = vxpose.xlu0.c.b16.cont [6/8] 0, 128
    %1282 = vxpose.xlu0.c.b16.cont [7/8] 0, 128
    %1283 = vxpose.xlu0.c.b16.end [8/8] 0, 128
    %v1284 = vpop.trf.xlu0
    %v1285 = vpop.trf.xlu0
    %v1286 = vpop.trf.xlu0
    %v1287 = vpop.trf.xlu0
    %v1288 = vpop.trf.xlu0
    %v1289 = vpop.trf.xlu0
    %v1290 = vpop.trf.xlu0
    %v1291 = vpop.trf.xlu0
    %v1292 = vcombine.low %v1044, %v1108
    %v1294 = vunpack.c.l.s4 1983009808
    %v1295 = vunpack.c.0.s8 %v1294
    %v1296 = vlaneseq
    %v1297 = vshrl.u32 %v1296, 7
    %v1298 = vsub.s32 %v1295, %v1297
    %v1299 = vrot.slane %v1292, %v1298
    %v1300 = vcombine.low %v1076, %v1140
    %v1302 = vunpack.c.l.s4 1983009808
    %v1303 = vunpack.c.0.s8 %v1302
    %v1304 = vlaneseq
    %v1305 = vshrl.u32 %v1304, 7
    %v1306 = vsub.s32 %v1303, %v1305
    %v1307 = vrot.slane %v1300, %v1306
    %v1308 = vcombine.low %v1299, %v1307
    %v1310 = vunpack.c.l.s4 1934713408
    %v1311 = vunpack.c.0.s8 %v1310
    %v1312 = vlaneseq
    %v1313 = vshrl.u32 %v1312, 7
    %v1314 = vsub.s32 %v1311, %v1313
    %v1315 = vrot.slane %v1308, %v1314
    %v1316 = vcombine.high %v1315, 0
    %v1317 = vcombine.low %v1060, %v1124
    %v1319 = vunpack.c.l.s4 1983009808
    %v1320 = vunpack.c.0.s8 %v1319
    %v1321 = vlaneseq
    %v1322 = vshrl.u32 %v1321, 7
    %v1323 = vsub.s32 %v1320, %v1322
    %v1324 = vrot.slane %v1317, %v1323
    %v1325 = vcombine.low %v1092, %v1156
    %v1327 = vunpack.c.l.s4 1983009808
    %v1328 = vunpack.c.0.s8 %v1327
    %v1329 = vlaneseq
    %v1330 = vshrl.u32 %v1329, 7
    %v1331 = vsub.s32 %v1328, %v1330
    %v1332 = vrot.slane %v1325, %v1331
    %v1333 = vcombine.low %v1324, %v1332
    %v1335 = vunpack.c.l.s4 1934713408
    %v1336 = vunpack.c.0.s8 %v1335
    %v1337 = vlaneseq
    %v1338 = vshrl.u32 %v1337, 7
    %v1339 = vsub.s32 %v1336, %v1338
    %v1340 = vrot.slane %v1333, %v1339
    %v1341 = vcombine.high %v1340, 0
    %v1342 = vcombine.low %v1172, %v1236
    %v1344 = vunpack.c.l.s4 1983009808
    %v1345 = vunpack.c.0.s8 %v1344
    %v1346 = vlaneseq
    %v1347 = vshrl.u32 %v1346, 7
    %v1348 = vsub.s32 %v1345, %v1347
    %v1349 = vrot.slane %v1342, %v1348
    %v1350 = vcombine.low %v1204, %v1268
    %v1352 = vunpack.c.l.s4 1983009808
    %v1353 = vunpack.c.0.s8 %v1352
    %v1354 = vlaneseq
    %v1355 = vshrl.u32 %v1354, 7
    %v1356 = vsub.s32 %v1353, %v1355
    %v1357 = vrot.slane %v1350, %v1356
    %v1358 = vcombine.low %v1349, %v1357
    %v1360 = vunpack.c.l.s4 1934713408
    %v1361 = vunpack.c.0.s8 %v1360
    %v1362 = vlaneseq
    %v1363 = vshrl.u32 %v1362, 7
    %v1364 = vsub.s32 %v1361, %v1363
    %v1365 = vrot.slane %v1358, %v1364
    %v1366 = vcombine.high %v1365, 0
    %v1367 = vcombine.low %v1188, %v1252
    %v1369 = vunpack.c.l.s4 1983009808
    %v1370 = vunpack.c.0.s8 %v1369
    %v1371 = vlaneseq
    %v1372 = vshrl.u32 %v1371, 7
    %v1373 = vsub.s32 %v1370, %v1372
    %v1374 = vrot.slane %v1367, %v1373
    %v1375 = vcombine.low %v1220, %v1284
    %v1377 = vunpack.c.l.s4 1983009808
    %v1378 = vunpack.c.0.s8 %v1377
    %v1379 = vlaneseq
    %v1380 = vshrl.u32 %v1379, 7
    %v1381 = vsub.s32 %v1378, %v1380
    %v1382 = vrot.slane %v1375, %v1381
    %v1383 = vcombine.low %v1374, %v1382
    %v1385 = vunpack.c.l.s4 1934713408
    %v1386 = vunpack.c.0.s8 %v1385
    %v1387 = vlaneseq
    %v1388 = vshrl.u32 %v1387, 7
    %v1389 = vsub.s32 %v1386, %v1388
    %v1390 = vrot.slane %v1383, %v1389
    %v1391 = vcombine.high %v1390, 0
    %v1394 = vpack.i.b16 %v1340, %v1315
    %v1395 = vshrl.u32 %v1315, 16
    %v1396 = vshrl.u32 %v1340, 16
    %v1397 = vpack.i.b16 %v1396, %v1395
    %v1400 = vpack.i.b16 %v1341, %v1316
    %v1401 = vshrl.u32 %v1316, 16
    %v1402 = vshrl.u32 %v1341, 16
    %v1403 = vpack.i.b16 %v1402, %v1401
    %v1406 = vpack.i.b16 %v1390, %v1365
    %v1407 = vshrl.u32 %v1365, 16
    %v1408 = vshrl.u32 %v1390, 16
    %v1409 = vpack.i.b16 %v1408, %v1407
    %v1412 = vpack.i.b16 %v1391, %v1366
    %v1413 = vshrl.u32 %v1366, 16
    %v1414 = vshrl.u32 %v1391, 16
    %v1415 = vpack.i.b16 %v1414, %v1413
    %1416 = vrot.lane.b32.xlu0 %v138, 64
    %v1417 = vpop.permute.xlu0 %1416
    %1418 = vrot.lane.b32.xlu0 %v141, 64
    %v1419 = vpop.permute.xlu0 %1418
    %1420 = vrot.lane.b32.xlu0 %v143, 64
    %v1421 = vpop.permute.xlu0 %1420
    %1422 = vrot.lane.b32.xlu0 %v145, 64
    %v1423 = vpop.permute.xlu0 %1422
    %v1426 = vpack.i.b16 %v1419, %v1417
    %v1428 = vshrl.u32 %v1417, 16
    %v1429 = vshrl.u32 %v1419, 16
    %v1430 = vpack.i.b16 %v1429, %v1428
    %v1434 = vpack.i.b16 %v1423, %v1421
    %v1436 = vshrl.u32 %v1421, 16
    %v1437 = vshrl.u32 %v1423, 16
    %v1438 = vpack.i.b16 %v1437, %v1436
    %v1440 = vcombine.high %v1426, %v163
    %v1442 = vunpack.c.l.s4 1983009808
    %v1443 = vunpack.c.0.s8 %v1442
    %v1444 = vlaneseq
    %v1445 = vshrl.u32 %v1444, 7
    %v1446 = vsub.s32 %v1443, %v1445
    %v1447 = vrot.slane %v1426, %v1446
    %v1449 = vunpack.c.l.s4 1983009808
    %v1450 = vunpack.c.0.s8 %v1449
    %v1451 = vlaneseq
    %v1452 = vshrl.u32 %v1451, 7
    %v1453 = vsub.s32 %v1450, %v1452
    %v1454 = vrot.slane %v1440, %v1453
    %v1455 = vcombine.high %v1434, %v163
    %v1457 = vunpack.c.l.s4 1983009808
    %v1458 = vunpack.c.0.s8 %v1457
    %v1459 = vlaneseq
    %v1460 = vshrl.u32 %v1459, 7
    %v1461 = vsub.s32 %v1458, %v1460
    %v1462 = vrot.slane %v1434, %v1461
    %v1464 = vunpack.c.l.s4 1983009808
    %v1465 = vunpack.c.0.s8 %v1464
    %v1466 = vlaneseq
    %v1467 = vshrl.u32 %v1466, 7
    %v1468 = vsub.s32 %v1465, %v1467
    %v1469 = vrot.slane %v1455, %v1468
    %v1470 = vcombine.low %v1447, %v1462
    %v1471 = vcombine.high %v1447, %v1462
    %v1473 = vunpack.c.l.s4 1934713408
    %v1474 = vunpack.c.0.s8 %v1473
    %v1475 = vlaneseq
    %v1476 = vshrl.u32 %v1475, 7
    %v1477 = vsub.s32 %v1474, %v1476
    %v1478 = vrot.slane %v1470, %v1477
    %v1480 = vunpack.c.l.s4 1934713408
    %v1481 = vunpack.c.0.s8 %v1480
    %v1482 = vlaneseq
    %v1483 = vshrl.u32 %v1482, 7
    %v1484 = vsub.s32 %v1481, %v1483
    %v1485 = vrot.slane %v1471, %v1484
    %v1486 = vcombine.low %v1454, %v1469
    %v1487 = vcombine.high %v1454, %v1469
    %v1489 = vunpack.c.l.s4 1934713408
    %v1490 = vunpack.c.0.s8 %v1489
    %v1491 = vlaneseq
    %v1492 = vshrl.u32 %v1491, 7
    %v1493 = vsub.s32 %v1490, %v1492
    %v1494 = vrot.slane %v1486, %v1493
    %v1496 = vunpack.c.l.s4 1934713408
    %v1497 = vunpack.c.0.s8 %v1496
    %v1498 = vlaneseq
    %v1499 = vshrl.u32 %v1498, 7
    %v1500 = vsub.s32 %v1497, %v1499
    %v1501 = vrot.slane %v1487, %v1500
    %v1502 = vcombine.high %v1478, 0
    %v1503 = vcombine.high %v1485, 0
    %v1504 = vcombine.high %v1494, 0
    %v1505 = vcombine.high %v1501, 0
    %v1506 = vcombine.high %v1430, %v166
    %v1508 = vunpack.c.l.s4 1983009808
    %v1509 = vunpack.c.0.s8 %v1508
    %v1510 = vlaneseq
    %v1511 = vshrl.u32 %v1510, 7
    %v1512 = vsub.s32 %v1509, %v1511
    %v1513 = vrot.slane %v1430, %v1512
    %v1515 = vunpack.c.l.s4 1983009808
    %v1516 = vunpack.c.0.s8 %v1515
    %v1517 = vlaneseq
    %v1518 = vshrl.u32 %v1517, 7
    %v1519 = vsub.s32 %v1516, %v1518
    %v1520 = vrot.slane %v1506, %v1519
    %v1521 = vcombine.high %v1438, %v166
    %v1523 = vunpack.c.l.s4 1983009808
    %v1524 = vunpack.c.0.s8 %v1523
    %v1525 = vlaneseq
    %v1526 = vshrl.u32 %v1525, 7
    %v1527 = vsub.s32 %v1524, %v1526
    %v1528 = vrot.slane %v1438, %v1527
    %v1530 = vunpack.c.l.s4 1983009808
    %v1531 = vunpack.c.0.s8 %v1530
    %v1532 = vlaneseq
    %v1533 = vshrl.u32 %v1532, 7
    %v1534 = vsub.s32 %v1531, %v1533
    %v1535 = vrot.slane %v1521, %v1534
    %v1536 = vcombine.low %v1513, %v1528
    %v1537 = vcombine.high %v1513, %v1528
    %v1539 = vunpack.c.l.s4 1934713408
    %v1540 = vunpack.c.0.s8 %v1539
    %v1541 = vlaneseq
    %v1542 = vshrl.u32 %v1541, 7
    %v1543 = vsub.s32 %v1540, %v1542
    %v1544 = vrot.slane %v1536, %v1543
    %v1546 = vunpack.c.l.s4 1934713408
    %v1547 = vunpack.c.0.s8 %v1546
    %v1548 = vlaneseq
    %v1549 = vshrl.u32 %v1548, 7
    %v1550 = vsub.s32 %v1547, %v1549
    %v1551 = vrot.slane %v1537, %v1550
    %v1552 = vcombine.low %v1520, %v1535
    %v1553 = vcombine.high %v1520, %v1535
    %v1555 = vunpack.c.l.s4 1934713408
    %v1556 = vunpack.c.0.s8 %v1555
    %v1557 = vlaneseq
    %v1558 = vshrl.u32 %v1557, 7
    %v1559 = vsub.s32 %v1556, %v1558
    %v1560 = vrot.slane %v1552, %v1559
    %v1562 = vunpack.c.l.s4 1934713408
    %v1563 = vunpack.c.0.s8 %v1562
    %v1564 = vlaneseq
    %v1565 = vshrl.u32 %v1564, 7
    %v1566 = vsub.s32 %v1563, %v1565
    %v1567 = vrot.slane %v1553, %v1566
    %v1568 = vcombine.high %v1544, 0
    %v1569 = vcombine.high %v1551, 0
    %v1570 = vcombine.high %v1560, 0
    %v1571 = vcombine.high %v1567, 0
    %v1572 = vcombine.low %v1478, %v1485
    %v1574 = vunpack.c.l.s4 1983009808
    %v1575 = vunpack.c.0.s8 %v1574
    %v1576 = vlaneseq
    %v1577 = vshrl.u32 %v1576, 7
    %v1578 = vsub.s32 %v1575, %v1577
    %v1579 = vrot.slane %v1572, %v1578
    %v1580 = vcombine.low %v1502, %v1503
    %v1582 = vunpack.c.l.s4 1983009808
    %v1583 = vunpack.c.0.s8 %v1582
    %v1584 = vlaneseq
    %v1585 = vshrl.u32 %v1584, 7
    %v1586 = vsub.s32 %v1583, %v1585
    %v1587 = vrot.slane %v1580, %v1586
    %v1588 = vcombine.low %v1579, %v1587
    %v1590 = vunpack.c.l.s4 1934713408
    %v1591 = vunpack.c.0.s8 %v1590
    %v1592 = vlaneseq
    %v1593 = vshrl.u32 %v1592, 7
    %v1594 = vsub.s32 %v1591, %v1593
    %v1595 = vrot.slane %v1588, %v1594
    %v1596 = vcombine.high %v1595, 0
    %v1597 = vcombine.low %v1544, %v1551
    %v1599 = vunpack.c.l.s4 1983009808
    %v1600 = vunpack.c.0.s8 %v1599
    %v1601 = vlaneseq
    %v1602 = vshrl.u32 %v1601, 7
    %v1603 = vsub.s32 %v1600, %v1602
    %v1604 = vrot.slane %v1597, %v1603
    %v1605 = vcombine.low %v1568, %v1569
    %v1607 = vunpack.c.l.s4 1983009808
    %v1608 = vunpack.c.0.s8 %v1607
    %v1609 = vlaneseq
    %v1610 = vshrl.u32 %v1609, 7
    %v1611 = vsub.s32 %v1608, %v1610
    %v1612 = vrot.slane %v1605, %v1611
    %v1613 = vcombine.low %v1604, %v1612
    %v1615 = vunpack.c.l.s4 1934713408
    %v1616 = vunpack.c.0.s8 %v1615
    %v1617 = vlaneseq
    %v1618 = vshrl.u32 %v1617, 7
    %v1619 = vsub.s32 %v1616, %v1618
    %v1620 = vrot.slane %v1613, %v1619
    %v1621 = vcombine.high %v1620, 0
    %v1622 = vcombine.low %v1494, %v1501
    %v1624 = vunpack.c.l.s4 1983009808
    %v1625 = vunpack.c.0.s8 %v1624
    %v1626 = vlaneseq
    %v1627 = vshrl.u32 %v1626, 7
    %v1628 = vsub.s32 %v1625, %v1627
    %v1629 = vrot.slane %v1622, %v1628
    %v1630 = vcombine.low %v1504, %v1505
    %v1632 = vunpack.c.l.s4 1983009808
    %v1633 = vunpack.c.0.s8 %v1632
    %v1634 = vlaneseq
    %v1635 = vshrl.u32 %v1634, 7
    %v1636 = vsub.s32 %v1633, %v1635
    %v1637 = vrot.slane %v1630, %v1636
    %v1638 = vcombine.low %v1629, %v1637
    %v1640 = vunpack.c.l.s4 1934713408
    %v1641 = vunpack.c.0.s8 %v1640
    %v1642 = vlaneseq
    %v1643 = vshrl.u32 %v1642, 7
    %v1644 = vsub.s32 %v1641, %v1643
    %v1645 = vrot.slane %v1638, %v1644
    %v1646 = vcombine.high %v1645, 0
    %v1647 = vcombine.low %v1560, %v1567
    %v1649 = vunpack.c.l.s4 1983009808
    %v1650 = vunpack.c.0.s8 %v1649
    %v1651 = vlaneseq
    %v1652 = vshrl.u32 %v1651, 7
    %v1653 = vsub.s32 %v1650, %v1652
    %v1654 = vrot.slane %v1647, %v1653
    %v1655 = vcombine.low %v1570, %v1571
    %v1657 = vunpack.c.l.s4 1983009808
    %v1658 = vunpack.c.0.s8 %v1657
    %v1659 = vlaneseq
    %v1660 = vshrl.u32 %v1659, 7
    %v1661 = vsub.s32 %v1658, %v1660
    %v1662 = vrot.slane %v1655, %v1661
    %v1663 = vcombine.low %v1654, %v1662
    %v1665 = vunpack.c.l.s4 1934713408
    %v1666 = vunpack.c.0.s8 %v1665
    %v1667 = vlaneseq
    %v1668 = vshrl.u32 %v1667, 7
    %v1669 = vsub.s32 %v1666, %v1668
    %v1670 = vrot.slane %v1663, %v1669
    %v1671 = vcombine.high %v1670, 0
    %v1674 = vpack.i.b16 %v1620, %v1595
    %v1675 = vshrl.u32 %v1595, 16
    %v1676 = vshrl.u32 %v1620, 16
    %v1677 = vpack.i.b16 %v1676, %v1675
    %v1680 = vpack.i.b16 %v1621, %v1596
    %v1681 = vshrl.u32 %v1596, 16
    %v1682 = vshrl.u32 %v1621, 16
    %v1683 = vpack.i.b16 %v1682, %v1681
    %v1686 = vpack.i.b16 %v1670, %v1645
    %v1687 = vshrl.u32 %v1645, 16
    %v1688 = vshrl.u32 %v1670, 16
    %v1689 = vpack.i.b16 %v1688, %v1687
    %v1692 = vpack.i.b16 %v1671, %v1646
    %v1693 = vshrl.u32 %v1646, 16
    %v1694 = vshrl.u32 %v1671, 16
    %v1695 = vpack.i.b16 %v1694, %v1693
    %vm1696 = vcmask 64512
    %v1698 = vsel %vm1696, %v402, 0
    %vm1700 = vcmask 1043456
    %v1702 = vsel %vm1700, %v1394, 0
    %1704 = vmatprep.subr.bf16.mxu0 0
    %1705 = vmatpush1.bf16.msra.mxu0 %v1702
    %1706 = vmatprep.subr.bf16.mxu0 0
    %1707 = vmatpush1.bf16.msra.mxu0 0
    %1708 = vmatprep.subr.bf16.mxu0 0
    %1709 = vmatpush1.bf16.msra.mxu0 0
    %1710 = vmatprep.subr.bf16.mxu0 0
    %1711 = vmatpush1.bf16.msra.mxu0 0
    %1712 = vmatprep.subr.bf16.mxu0 0
    %1713 = vmatpush1.bf16.msra.mxu0 0
    %1714 = vmatprep.subr.bf16.mxu0 0
    %1715 = vmatpush1.bf16.msra.mxu0 0
    %1716 = vmatprep.subr.bf16.mxu0 0
    %1717 = vmatpush1.bf16.msra.mxu0 0
    %1718 = vmatprep.subr.bf16.mxu0 0
    %1719 = vmatpush1.bf16.msra.mxu0 0
    %1720 = vmatprep.subr.bf16.mxu0 0
    %1721 = vmatpush1.bf16.msra.mxu0 0
    %1722 = vmatprep.subr.bf16.mxu0 0
    %1723 = vmatpush1.bf16.msra.mxu0 0
    %1724 = vmatprep.subr.bf16.mxu0 0
    %1725 = vmatpush1.bf16.msra.mxu0 0
    %1726 = vmatprep.subr.bf16.mxu0 0
    %1727 = vmatpush1.bf16.msra.mxu0 0
    %1728 = vmatprep.subr.bf16.mxu0 0
    %1729 = vmatpush1.bf16.msra.mxu0 0
    %1730 = vmatprep.subr.bf16.mxu0 0
    %1731 = vmatpush1.bf16.msra.mxu0 0
    %1732 = vmatprep.subr.bf16.mxu0 0
    %1733 = vmatpush1.bf16.msra.mxu0 0
    %1734 = vmatprep.subr.bf16.mxu0 0
    %1735 = vmatpush1.bf16.msra.mxu0 0
    %1736 = vmatprep.mubr.bf16.mxu0 0
    %1737 = vmatmul.mubr.bf16.gmra.mrb[0].mxu0 %v1698
    %v1738 = vpop.f32.mrb[0].mxu0
    %v1739 = vadd.f32 0.0, %v1738
    %v1740 = vpop.f32.mrb[0].mxu0
    %v1741 = vpop.f32.mrb[0].mxu0
    %v1742 = vpop.f32.mrb[0].mxu0
    %1743 = vdwg.mxu0
    %v1745 = vsel %vm1696, %v414, 0
    %v1748 = vsel %vm1700, %v1406, 0
    %1750 = vmatprep.subr.bf16.mxu0 0
    %1751 = vmatpush1.bf16.msra.mxu0 %v1748
    %1752 = vmatprep.subr.bf16.mxu0 0
    %1753 = vmatpush1.bf16.msra.mxu0 0
    %1754 = vmatprep.subr.bf16.mxu0 0
    %1755 = vmatpush1.bf16.msra.mxu0 0
    %1756 = vmatprep.subr.bf16.mxu0 0
    %1757 = vmatpush1.bf16.msra.mxu0 0
    %1758 = vmatprep.subr.bf16.mxu0 0
    %1759 = vmatpush1.bf16.msra.mxu0 0
    %1760 = vmatprep.subr.bf16.mxu0 0
    %1761 = vmatpush1.bf16.msra.mxu0 0
    %1762 = vmatprep.subr.bf16.mxu0 0
    %1763 = vmatpush1.bf16.msra.mxu0 0
    %1764 = vmatprep.subr.bf16.mxu0 0
    %1765 = vmatpush1.bf16.msra.mxu0 0
    %1766 = vmatprep.subr.bf16.mxu0 0
    %1767 = vmatpush1.bf16.msra.mxu0 0
    %1768 = vmatprep.subr.bf16.mxu0 0
    %1769 = vmatpush1.bf16.msra.mxu0 0
    %1770 = vmatprep.subr.bf16.mxu0 0
    %1771 = vmatpush1.bf16.msra.mxu0 0
    %1772 = vmatprep.subr.bf16.mxu0 0
    %1773 = vmatpush1.bf16.msra.mxu0 0
    %1774 = vmatprep.subr.bf16.mxu0 0
    %1775 = vmatpush1.bf16.msra.mxu0 0
    %1776 = vmatprep.subr.bf16.mxu0 0
    %1777 = vmatpush1.bf16.msra.mxu0 0
    %1778 = vmatprep.subr.bf16.mxu0 0
    %1779 = vmatpush1.bf16.msra.mxu0 0
    %1780 = vmatprep.subr.bf16.mxu0 0
    %1781 = vmatpush1.bf16.msra.mxu0 0
    %1782 = vmatprep.mubr.bf16.mxu0 0
    %1783 = vmatmul.mubr.bf16.gmra.mrb[0].mxu0 %v1745
    %v1784 = vpop.f32.mrb[0].mxu0
    %v1785 = vadd.f32 0.0, %v1784
    %v1786 = vpop.f32.mrb[0].mxu0
    %v1787 = vpop.f32.mrb[0].mxu0
    %v1788 = vpop.f32.mrb[0].mxu0
    %1789 = vdwg.mxu0
    %v1791 = vsel %vm1696, %v405, 0
    %v1794 = vsel %vm1700, %v1397, 0
    %1796 = vmatprep.subr.bf16.mxu0 0
    %1797 = vmatpush1.bf16.msra.mxu0 %v1794
    %1798 = vmatprep.subr.bf16.mxu0 0
    %1799 = vmatpush1.bf16.msra.mxu0 0
    %1800 = vmatprep.subr.bf16.mxu0 0
    %1801 = vmatpush1.bf16.msra.mxu0 0
    %1802 = vmatprep.subr.bf16.mxu0 0
    %1803 = vmatpush1.bf16.msra.mxu0 0
    %1804 = vmatprep.subr.bf16.mxu0 0
    %1805 = vmatpush1.bf16.msra.mxu0 0
    %1806 = vmatprep.subr.bf16.mxu0 0
    %1807 = vmatpush1.bf16.msra.mxu0 0
    %1808 = vmatprep.subr.bf16.mxu0 0
    %1809 = vmatpush1.bf16.msra.mxu0 0
    %1810 = vmatprep.subr.bf16.mxu0 0
    %1811 = vmatpush1.bf16.msra.mxu0 0
    %1812 = vmatprep.subr.bf16.mxu0 0
    %1813 = vmatpush1.bf16.msra.mxu0 0
    %1814 = vmatprep.subr.bf16.mxu0 0
    %1815 = vmatpush1.bf16.msra.mxu0 0
    %1816 = vmatprep.subr.bf16.mxu0 0
    %1817 = vmatpush1.bf16.msra.mxu0 0
    %1818 = vmatprep.subr.bf16.mxu0 0
    %1819 = vmatpush1.bf16.msra.mxu0 0
    %1820 = vmatprep.subr.bf16.mxu0 0
    %1821 = vmatpush1.bf16.msra.mxu0 0
    %1822 = vmatprep.subr.bf16.mxu0 0
    %1823 = vmatpush1.bf16.msra.mxu0 0
    %1824 = vmatprep.subr.bf16.mxu0 0
    %1825 = vmatpush1.bf16.msra.mxu0 0
    %1826 = vmatprep.subr.bf16.mxu0 0
    %1827 = vmatpush1.bf16.msra.mxu0 0
    %1828 = vmatprep.mubr.bf16.mxu0 0
    %1829 = vmatmul.mubr.bf16.gmra.mrb[0].mxu0 %v1791
    %v1830 = vpop.f32.mrb[0].mxu0
    %v1831 = vadd.f32 0.0, %v1830
    %v1832 = vpop.f32.mrb[0].mxu0
    %v1833 = vpop.f32.mrb[0].mxu0
    %v1834 = vpop.f32.mrb[0].mxu0
    %1835 = vdwg.mxu0
    %v1837 = vsel %vm1696, %v417, 0
    %v1840 = vsel %vm1700, %v1409, 0
    %1842 = vmatprep.subr.bf16.mxu0 0
    %1843 = vmatpush1.bf16.msra.mxu0 %v1840
    %1844 = vmatprep.subr.bf16.mxu0 0
    %1845 = vmatpush1.bf16.msra.mxu0 0
    %1846 = vmatprep.subr.bf16.mxu0 0
    %1847 = vmatpush1.bf16.msra.mxu0 0
    %1848 = vmatprep.subr.bf16.mxu0 0
    %1849 = vmatpush1.bf16.msra.mxu0 0
    %1850 = vmatprep.subr.bf16.mxu0 0
    %1851 = vmatpush1.bf16.msra.mxu0 0
    %1852 = vmatprep.subr.bf16.mxu0 0
    %1853 = vmatpush1.bf16.msra.mxu0 0
    %1854 = vmatprep.subr.bf16.mxu0 0
    %1855 = vmatpush1.bf16.msra.mxu0 0
    %1856 = vmatprep.subr.bf16.mxu0 0
    %1857 = vmatpush1.bf16.msra.mxu0 0
    %1858 = vmatprep.subr.bf16.mxu0 0
    %1859 = vmatpush1.bf16.msra.mxu0 0
    %1860 = vmatprep.subr.bf16.mxu0 0
    %1861 = vmatpush1.bf16.msra.mxu0 0
    %1862 = vmatprep.subr.bf16.mxu0 0
    %1863 = vmatpush1.bf16.msra.mxu0 0
    %1864 = vmatprep.subr.bf16.mxu0 0
    %1865 = vmatpush1.bf16.msra.mxu0 0
    %1866 = vmatprep.subr.bf16.mxu0 0
    %1867 = vmatpush1.bf16.msra.mxu0 0
    %1868 = vmatprep.subr.bf16.mxu0 0
    %1869 = vmatpush1.bf16.msra.mxu0 0
    %1870 = vmatprep.subr.bf16.mxu0 0
    %1871 = vmatpush1.bf16.msra.mxu0 0
    %1872 = vmatprep.subr.bf16.mxu0 0
    %1873 = vmatpush1.bf16.msra.mxu0 0
    %1874 = vmatprep.mubr.bf16.mxu0 0
    %1875 = vmatmul.mubr.bf16.gmra.mrb[0].mxu0 %v1837
    %v1876 = vpop.f32.mrb[0].mxu0
    %v1877 = vadd.f32 0.0, %v1876
    %v1878 = vpop.f32.mrb[0].mxu0
    %v1879 = vpop.f32.mrb[0].mxu0
    %v1880 = vpop.f32.mrb[0].mxu0
    %1881 = vdwg.mxu0
    %v1883 = vsel %vm1696, %v408, 0
    %v1886 = vsel %vm1700, %v1400, 0
    %1888 = vmatprep.subr.bf16.mxu0 0
    %1889 = vmatpush1.bf16.msra.mxu0 %v1886
    %1890 = vmatprep.subr.bf16.mxu0 0
    %1891 = vmatpush1.bf16.msra.mxu0 0
    %1892 = vmatprep.subr.bf16.mxu0 0
    %1893 = vmatpush1.bf16.msra.mxu0 0
    %1894 = vmatprep.subr.bf16.mxu0 0
    %1895 = vmatpush1.bf16.msra.mxu0 0
    %1896 = vmatprep.subr.bf16.mxu0 0
    %1897 = vmatpush1.bf16.msra.mxu0 0
    %1898 = vmatprep.subr.bf16.mxu0 0
    %1899 = vmatpush1.bf16.msra.mxu0 0
    %1900 = vmatprep.subr.bf16.mxu0 0
    %1901 = vmatpush1.bf16.msra.mxu0 0
    %1902 = vmatprep.subr.bf16.mxu0 0
    %1903 = vmatpush1.bf16.msra.mxu0 0
    %1904 = vmatprep.subr.bf16.mxu0 0
    %1905 = vmatpush1.bf16.msra.mxu0 0
    %1906 = vmatprep.subr.bf16.mxu0 0
    %1907 = vmatpush1.bf16.msra.mxu0 0
    %1908 = vmatprep.subr.bf16.mxu0 0
    %1909 = vmatpush1.bf16.msra.mxu0 0
    %1910 = vmatprep.subr.bf16.mxu0 0
    %1911 = vmatpush1.bf16.msra.mxu0 0
    %1912 = vmatprep.subr.bf16.mxu0 0
    %1913 = vmatpush1.bf16.msra.mxu0 0
    %1914 = vmatprep.subr.bf16.mxu0 0
    %1915 = vmatpush1.bf16.msra.mxu0 0
    %1916 = vmatprep.subr.bf16.mxu0 0
    %1917 = vmatpush1.bf16.msra.mxu0 0
    %1918 = vmatprep.subr.bf16.mxu0 0
    %1919 = vmatpush1.bf16.msra.mxu0 0
    %1920 = vmatprep.mubr.bf16.mxu0 0
    %1921 = vmatmul.mubr.bf16.gmra.mrb[0].mxu0 %v1883
    %v1922 = vpop.f32.mrb[0].mxu0
    %v1923 = vadd.f32 0.0, %v1922
    %v1924 = vpop.f32.mrb[0].mxu0
    %v1925 = vpop.f32.mrb[0].mxu0
    %v1926 = vpop.f32.mrb[0].mxu0
    %1927 = vdwg.mxu0
    %v1929 = vsel %vm1696, %v420, 0
    %v1932 = vsel %vm1700, %v1412, 0
    %1934 = vmatprep.subr.bf16.mxu0 0
    %1935 = vmatpush1.bf16.msra.mxu0 %v1932
    %1936 = vmatprep.subr.bf16.mxu0 0
    %1937 = vmatpush1.bf16.msra.mxu0 0
    %1938 = vmatprep.subr.bf16.mxu0 0
    %1939 = vmatpush1.bf16.msra.mxu0 0
    %1940 = vmatprep.subr.bf16.mxu0 0
    %1941 = vmatpush1.bf16.msra.mxu0 0
    %1942 = vmatprep.subr.bf16.mxu0 0
    %1943 = vmatpush1.bf16.msra.mxu0 0
    %1944 = vmatprep.subr.bf16.mxu0 0
    %1945 = vmatpush1.bf16.msra.mxu0 0
    %1946 = vmatprep.subr.bf16.mxu0 0
    %1947 = vmatpush1.bf16.msra.mxu0 0
    %1948 = vmatprep.subr.bf16.mxu0 0
    %1949 = vmatpush1.bf16.msra.mxu0 0
    %1950 = vmatprep.subr.bf16.mxu0 0
    %1951 = vmatpush1.bf16.msra.mxu0 0
    %1952 = vmatprep.subr.bf16.mxu0 0
    %1953 = vmatpush1.bf16.msra.mxu0 0
    %1954 = vmatprep.subr.bf16.mxu0 0
    %1955 = vmatpush1.bf16.msra.mxu0 0
    %1956 = vmatprep.subr.bf16.mxu0 0
    %1957 = vmatpush1.bf16.msra.mxu0 0
    %1958 = vmatprep.subr.bf16.mxu0 0
    %1959 = vmatpush1.bf16.msra.mxu0 0
    %1960 = vmatprep.subr.bf16.mxu0 0
    %1961 = vmatpush1.bf16.msra.mxu0 0
    %1962 = vmatprep.subr.bf16.mxu0 0
    %1963 = vmatpush1.bf16.msra.mxu0 0
    %1964 = vmatprep.subr.bf16.mxu0 0
    %1965 = vmatpush1.bf16.msra.mxu0 0
    %1966 = vmatprep.mubr.bf16.mxu0 0
    %1967 = vmatmul.mubr.bf16.gmra.mrb[0].mxu0 %v1929
    %v1968 = vpop.f32.mrb[0].mxu0
    %v1969 = vadd.f32 0.0, %v1968
    %v1970 = vpop.f32.mrb[0].mxu0
    %v1971 = vpop.f32.mrb[0].mxu0
    %v1972 = vpop.f32.mrb[0].mxu0
    %1973 = vdwg.mxu0
    %v1975 = vsel %vm1696, %v411, 0
    %v1978 = vsel %vm1700, %v1403, 0
    %1980 = vmatprep.subr.bf16.mxu0 0
    %1981 = vmatpush1.bf16.msra.mxu0 %v1978
    %1982 = vmatprep.subr.bf16.mxu0 0
    %1983 = vmatpush1.bf16.msra.mxu0 0
    %1984 = vmatprep.subr.bf16.mxu0 0
    %1985 = vmatpush1.bf16.msra.mxu0 0
    %1986 = vmatprep.subr.bf16.mxu0 0
    %1987 = vmatpush1.bf16.msra.mxu0 0
    %1988 = vmatprep.subr.bf16.mxu0 0
    %1989 = vmatpush1.bf16.msra.mxu0 0
    %1990 = vmatprep.subr.bf16.mxu0 0
    %1991 = vmatpush1.bf16.msra.mxu0 0
    %1992 = vmatprep.subr.bf16.mxu0 0
    %1993 = vmatpush1.bf16.msra.mxu0 0
    %1994 = vmatprep.subr.bf16.mxu0 0
    %1995 = vmatpush1.bf16.msra.mxu0 0
    %1996 = vmatprep.subr.bf16.mxu0 0
    %1997 = vmatpush1.bf16.msra.mxu0 0
    %1998 = vmatprep.subr.bf16.mxu0 0
    %1999 = vmatpush1.bf16.msra.mxu0 0
    %2000 = vmatprep.subr.bf16.mxu0 0
    %2001 = vmatpush1.bf16.msra.mxu0 0
    %2002 = vmatprep.subr.bf16.mxu0 0
    %2003 = vmatpush1.bf16.msra.mxu0 0
    %2004 = vmatprep.subr.bf16.mxu0 0
    %2005 = vmatpush1.bf16.msra.mxu0 0
    %2006 = vmatprep.subr.bf16.mxu0 0
    %2007 = vmatpush1.bf16.msra.mxu0 0
    %2008 = vmatprep.subr.bf16.mxu0 0
    %2009 = vmatpush1.bf16.msra.mxu0 0
    %2010 = vmatprep.subr.bf16.mxu0 0
    %2011 = vmatpush1.bf16.msra.mxu0 0
    %2012 = vmatprep.mubr.bf16.mxu0 0
    %2013 = vmatmul.mubr.bf16.gmra.mrb[0].mxu0 %v1975
    %v2014 = vpop.f32.mrb[0].mxu0
    %v2015 = vadd.f32 0.0, %v2014
    %v2016 = vpop.f32.mrb[0].mxu0
    %v2017 = vpop.f32.mrb[0].mxu0
    %v2018 = vpop.f32.mrb[0].mxu0
    %2019 = vdwg.mxu0
    %v2021 = vsel %vm1696, %v423, 0
    %v2024 = vsel %vm1700, %v1415, 0
    %2026 = vmatprep.subr.bf16.mxu0 0
    %2027 = vmatpush1.bf16.msra.mxu0 %v2024
    %2028 = vmatprep.subr.bf16.mxu0 0
    %2029 = vmatpush1.bf16.msra.mxu0 0
    %2030 = vmatprep.subr.bf16.mxu0 0
    %2031 = vmatpush1.bf16.msra.mxu0 0
    %2032 = vmatprep.subr.bf16.mxu0 0
    %2033 = vmatpush1.bf16.msra.mxu0 0
    %2034 = vmatprep.subr.bf16.mxu0 0
    %2035 = vmatpush1.bf16.msra.mxu0 0
    %2036 = vmatprep.subr.bf16.mxu0 0
    %2037 = vmatpush1.bf16.msra.mxu0 0
    %2038 = vmatprep.subr.bf16.mxu0 0
    %2039 = vmatpush1.bf16.msra.mxu0 0
    %2040 = vmatprep.subr.bf16.mxu0 0
    %2041 = vmatpush1.bf16.msra.mxu0 0
    %2042 = vmatprep.subr.bf16.mxu0 0
    %2043 = vmatpush1.bf16.msra.mxu0 0
    %2044 = vmatprep.subr.bf16.mxu0 0
    %2045 = vmatpush1.bf16.msra.mxu0 0
    %2046 = vmatprep.subr.bf16.mxu0 0
    %2047 = vmatpush1.bf16.msra.mxu0 0
    %2048 = vmatprep.subr.bf16.mxu0 0
    %2049 = vmatpush1.bf16.msra.mxu0 0
    %2050 = vmatprep.subr.bf16.mxu0 0
    %2051 = vmatpush1.bf16.msra.mxu0 0
    %2052 = vmatprep.subr.bf16.mxu0 0
    %2053 = vmatpush1.bf16.msra.mxu0 0
    %2054 = vmatprep.subr.bf16.mxu0 0
    %2055 = vmatpush1.bf16.msra.mxu0 0
    %2056 = vmatprep.subr.bf16.mxu0 0
    %2057 = vmatpush1.bf16.msra.mxu0 0
    %2058 = vmatprep.mubr.bf16.mxu0 0
    %2059 = vmatmul.mubr.bf16.gmra.mrb[0].mxu0 %v2021
    %v2060 = vpop.f32.mrb[0].mxu0
    %v2061 = vadd.f32 0.0, %v2060
    %v2062 = vpop.f32.mrb[0].mxu0
    %v2063 = vpop.f32.mrb[0].mxu0
    %v2064 = vpop.f32.mrb[0].mxu0
    %2065 = vdwg.mxu0
    %v2066 = vsel %vm1696, %v1739, -inf
    %2067 = vmax.xlane.f32.xlu0 %v2066
    %v2068 = vpop.xlane.xlu0 %2067
    %v2069 = vsel %vm1696, %v1785, -inf
    %2070 = vmax.xlane.f32.xlu0 %v2069
    %v2071 = vpop.xlane.xlu0 %2070
    %v2072 = vsel %vm1696, %v1831, -inf
    %2073 = vmax.xlane.f32.xlu0 %v2072
    %v2074 = vpop.xlane.xlu0 %2073
    %v2075 = vsel %vm1696, %v1877, -inf
    %2076 = vmax.xlane.f32.xlu0 %v2075
    %v2077 = vpop.xlane.xlu0 %2076
    %v2078 = vsel %vm1696, %v1923, -inf
    %2079 = vmax.xlane.f32.xlu0 %v2078
    %v2080 = vpop.xlane.xlu0 %2079
    %v2081 = vsel %vm1696, %v1969, -inf
    %2082 = vmax.xlane.f32.xlu0 %v2081
    %v2083 = vpop.xlane.xlu0 %2082
    %v2084 = vsel %vm1696, %v2015, -inf
    %2085 = vmax.xlane.f32.xlu0 %v2084
    %v2086 = vpop.xlane.xlu0 %2085
    %v2087 = vsel %vm1696, %v2061, -inf
    %2088 = vmax.xlane.f32.xlu0 %v2087
    %v2089 = vpop.xlane.xlu0 %2088
    %v2090 = vsub.f32 %v1739, %v2068
    %v2091 = vsub.f32 %v1785, %v2071
    %v2092 = vsub.f32 %v1831, %v2074
    %v2093 = vsub.f32 %v1877, %v2077
    %v2094 = vsub.f32 %v1923, %v2080
    %v2095 = vsub.f32 %v1969, %v2083
    %v2096 = vsub.f32 %v2015, %v2086
    %v2097 = vsub.f32 %v2061, %v2089
    %v2098 = vmul.f32 %v2090, 1.442695
    %v2099 = vpow.pop %v2098
    %v2100 = vmul.f32 %v2091, 1.442695
    %v2101 = vpow.pop %v2100
    %v2102 = vmul.f32 %v2092, 1.442695
    %v2103 = vpow.pop %v2102
    %v2104 = vmul.f32 %v2093, 1.442695
    %v2105 = vpow.pop %v2104
    %v2106 = vmul.f32 %v2094, 1.442695
    %v2107 = vpow.pop %v2106
    %v2108 = vmul.f32 %v2095, 1.442695
    %v2109 = vpow.pop %v2108
    %v2110 = vmul.f32 %v2096, 1.442695
    %v2111 = vpow.pop %v2110
    %v2112 = vmul.f32 %v2097, 1.442695
    %v2113 = vpow.pop %v2112
    %v2114 = vsel %vm1696, %v2099, 0.0
    %2115 = vadd.xlane.f32.xlu0 %v2114
    %v2116 = vpop.xlane.xlu0 %2115
    %v2117 = vsel %vm1696, %v2101, 0.0
    %2118 = vadd.xlane.f32.xlu0 %v2117
    %v2119 = vpop.xlane.xlu0 %2118
    %v2120 = vsel %vm1696, %v2103, 0.0
    %2121 = vadd.xlane.f32.xlu0 %v2120
    %v2122 = vpop.xlane.xlu0 %2121
    %v2123 = vsel %vm1696, %v2105, 0.0
    %2124 = vadd.xlane.f32.xlu0 %v2123
    %v2125 = vpop.xlane.xlu0 %2124
    %v2126 = vsel %vm1696, %v2107, 0.0
    %2127 = vadd.xlane.f32.xlu0 %v2126
    %v2128 = vpop.xlane.xlu0 %2127
    %v2129 = vsel %vm1696, %v2109, 0.0
    %2130 = vadd.xlane.f32.xlu0 %v2129
    %v2131 = vpop.xlane.xlu0 %2130
    %v2132 = vsel %vm1696, %v2111, 0.0
    %2133 = vadd.xlane.f32.xlu0 %v2132
    %v2134 = vpop.xlane.xlu0 %2133
    %v2135 = vsel %vm1696, %v2113, 0.0
    %2136 = vadd.xlane.f32.xlu0 %v2135
    %v2137 = vpop.xlane.xlu0 %2136
    %v2138 = vpack.c.bf16 %v2099, %v2099
    %v2139 = vpack.c.bf16 %v2101, %v2101
    %v2140 = vpack.c.bf16 %v2103, %v2103
    %v2141 = vpack.c.bf16 %v2105, %v2105
    %v2142 = vpack.c.bf16 %v2107, %v2107
    %v2143 = vpack.c.bf16 %v2109, %v2109
    %v2144 = vpack.c.bf16 %v2111, %v2111
    %v2145 = vpack.c.bf16 %v2113, %v2113
    %v2147 = vsel %vm1696, %v2138, 0
    %v2150 = vsel %vm1700, %v1674, 0
    %2152 = vmatprep.subr.bf16.mxu0 0
    %2153 = vmatpush1.bf16.msra.mxu0 %v2150
    %2154 = vmatprep.subr.bf16.mxu0 0
    %2155 = vmatpush1.bf16.msra.mxu0 0
    %2156 = vmatprep.subr.bf16.mxu0 0
    %2157 = vmatpush1.bf16.msra.mxu0 0
    %2158 = vmatprep.subr.bf16.mxu0 0
    %2159 = vmatpush1.bf16.msra.mxu0 0
    %2160 = vmatprep.subr.bf16.mxu0 0
    %2161 = vmatpush1.bf16.msra.mxu0 0
    %2162 = vmatprep.subr.bf16.mxu0 0
    %2163 = vmatpush1.bf16.msra.mxu0 0
    %2164 = vmatprep.subr.bf16.mxu0 0
    %2165 = vmatpush1.bf16.msra.mxu0 0
    %2166 = vmatprep.subr.bf16.mxu0 0
    %2167 = vmatpush1.bf16.msra.mxu0 0
    %2168 = vmatprep.subr.bf16.mxu0 0
    %2169 = vmatpush1.bf16.msra.mxu0 0
    %2170 = vmatprep.subr.bf16.mxu0 0
    %2171 = vmatpush1.bf16.msra.mxu0 0
    %2172 = vmatprep.subr.bf16.mxu0 0
    %2173 = vmatpush1.bf16.msra.mxu0 0
    %2174 = vmatprep.subr.bf16.mxu0 0
    %2175 = vmatpush1.bf16.msra.mxu0 0
    %2176 = vmatprep.subr.bf16.mxu0 0
    %2177 = vmatpush1.bf16.msra.mxu0 0
    %2178 = vmatprep.subr.bf16.mxu0 0
    %2179 = vmatpush1.bf16.msra.mxu0 0
    %2180 = vmatprep.subr.bf16.mxu0 0
    %2181 = vmatpush1.bf16.msra.mxu0 0
    %2182 = vmatprep.subr.bf16.mxu0 0
    %2183 = vmatpush1.bf16.msra.mxu0 0
    %2184 = vmatprep.mubr.bf16.mxu0 0
    %2185 = vmatmul.mubr.bf16.gmra.mrb[0].mxu0 %v2147
    %v2186 = vpop.f32.mrb[0].mxu0
    %v2187 = vadd.f32 0.0, %v2186
    %v2188 = vpop.f32.mrb[0].mxu0
    %v2189 = vpop.f32.mrb[0].mxu0
    %v2190 = vpop.f32.mrb[0].mxu0
    %2191 = vdwg.mxu0
    %v2193 = vsel %vm1696, %v2139, 0
    %v2196 = vsel %vm1700, %v1686, 0
    %2198 = vmatprep.subr.bf16.mxu0 0
    %2199 = vmatpush1.bf16.msra.mxu0 %v2196
    %2200 = vmatprep.subr.bf16.mxu0 0
    %2201 = vmatpush1.bf16.msra.mxu0 0
    %2202 = vmatprep.subr.bf16.mxu0 0
    %2203 = vmatpush1.bf16.msra.mxu0 0
    %2204 = vmatprep.subr.bf16.mxu0 0
    %2205 = vmatpush1.bf16.msra.mxu0 0
    %2206 = vmatprep.subr.bf16.mxu0 0
    %2207 = vmatpush1.bf16.msra.mxu0 0
    %2208 = vmatprep.subr.bf16.mxu0 0
    %2209 = vmatpush1.bf16.msra.mxu0 0
    %2210 = vmatprep.subr.bf16.mxu0 0
    %2211 = vmatpush1.bf16.msra.mxu0 0
    %2212 = vmatprep.subr.bf16.mxu0 0
    %2213 = vmatpush1.bf16.msra.mxu0 0
    %2214 = vmatprep.subr.bf16.mxu0 0
    %2215 = vmatpush1.bf16.msra.mxu0 0
    %2216 = vmatprep.subr.bf16.mxu0 0
    %2217 = vmatpush1.bf16.msra.mxu0 0
    %2218 = vmatprep.subr.bf16.mxu0 0
    %2219 = vmatpush1.bf16.msra.mxu0 0
    %2220 = vmatprep.subr.bf16.mxu0 0
    %2221 = vmatpush1.bf16.msra.mxu0 0
    %2222 = vmatprep.subr.bf16.mxu0 0
    %2223 = vmatpush1.bf16.msra.mxu0 0
    %2224 = vmatprep.subr.bf16.mxu0 0
    %2225 = vmatpush1.bf16.msra.mxu0 0
    %2226 = vmatprep.subr.bf16.mxu0 0
    %2227 = vmatpush1.bf16.msra.mxu0 0
    %2228 = vmatprep.subr.bf16.mxu0 0
    %2229 = vmatpush1.bf16.msra.mxu0 0
    %2230 = vmatprep.mubr.bf16.mxu0 0
    %2231 = vmatmul.mubr.bf16.gmra.mrb[0].mxu0 %v2193
    %v2232 = vpop.f32.mrb[0].mxu0
    %v2233 = vadd.f32 0.0, %v2232
    %v2234 = vpop.f32.mrb[0].mxu0
    %v2235 = vpop.f32.mrb[0].mxu0
    %v2236 = vpop.f32.mrb[0].mxu0
    %2237 = vdwg.mxu0
    %v2239 = vsel %vm1696, %v2140, 0
    %v2242 = vsel %vm1700, %v1677, 0
    %2244 = vmatprep.subr.bf16.mxu0 0
    %2245 = vmatpush1.bf16.msra.mxu0 %v2242
    %2246 = vmatprep.subr.bf16.mxu0 0
    %2247 = vmatpush1.bf16.msra.mxu0 0
    %2248 = vmatprep.subr.bf16.mxu0 0
    %2249 = vmatpush1.bf16.msra.mxu0 0
    %2250 = vmatprep.subr.bf16.mxu0 0
    %2251 = vmatpush1.bf16.msra.mxu0 0
    %2252 = vmatprep.subr.bf16.mxu0 0
    %2253 = vmatpush1.bf16.msra.mxu0 0
    %2254 = vmatprep.subr.bf16.mxu0 0
    %2255 = vmatpush1.bf16.msra.mxu0 0
    %2256 = vmatprep.subr.bf16.mxu0 0
    %2257 = vmatpush1.bf16.msra.mxu0 0
    %2258 = vmatprep.subr.bf16.mxu0 0
    %2259 = vmatpush1.bf16.msra.mxu0 0
    %2260 = vmatprep.subr.bf16.mxu0 0
    %2261 = vmatpush1.bf16.msra.mxu0 0
    %2262 = vmatprep.subr.bf16.mxu0 0
    %2263 = vmatpush1.bf16.msra.mxu0 0
    %2264 = vmatprep.subr.bf16.mxu0 0
    %2265 = vmatpush1.bf16.msra.mxu0 0
    %2266 = vmatprep.subr.bf16.mxu0 0
    %2267 = vmatpush1.bf16.msra.mxu0 0
    %2268 = vmatprep.subr.bf16.mxu0 0
    %2269 = vmatpush1.bf16.msra.mxu0 0
    %2270 = vmatprep.subr.bf16.mxu0 0
    %2271 = vmatpush1.bf16.msra.mxu0 0
    %2272 = vmatprep.subr.bf16.mxu0 0
    %2273 = vmatpush1.bf16.msra.mxu0 0
    %2274 = vmatprep.subr.bf16.mxu0 0
    %2275 = vmatpush1.bf16.msra.mxu0 0
    %2276 = vmatprep.mubr.bf16.mxu0 0
    %2277 = vmatmul.mubr.bf16.gmra.mrb[0].mxu0 %v2239
    %v2278 = vpop.f32.mrb[0].mxu0
    %v2279 = vadd.f32 0.0, %v2278
    %v2280 = vpop.f32.mrb[0].mxu0
    %v2281 = vpop.f32.mrb[0].mxu0
    %v2282 = vpop.f32.mrb[0].mxu0
    %2283 = vdwg.mxu0
    %v2285 = vsel %vm1696, %v2141, 0
    %v2288 = vsel %vm1700, %v1689, 0
    %2290 = vmatprep.subr.bf16.mxu0 0
    %2291 = vmatpush1.bf16.msra.mxu0 %v2288
    %2292 = vmatprep.subr.bf16.mxu0 0
    %2293 = vmatpush1.bf16.msra.mxu0 0
    %2294 = vmatprep.subr.bf16.mxu0 0
    %2295 = vmatpush1.bf16.msra.mxu0 0
    %2296 = vmatprep.subr.bf16.mxu0 0
    %2297 = vmatpush1.bf16.msra.mxu0 0
    %2298 = vmatprep.subr.bf16.mxu0 0
    %2299 = vmatpush1.bf16.msra.mxu0 0
    %2300 = vmatprep.subr.bf16.mxu0 0
    %2301 = vmatpush1.bf16.msra.mxu0 0
    %2302 = vmatprep.subr.bf16.mxu0 0
    %2303 = vmatpush1.bf16.msra.mxu0 0
    %2304 = vmatprep.subr.bf16.mxu0 0
    %2305 = vmatpush1.bf16.msra.mxu0 0
    %2306 = vmatprep.subr.bf16.mxu0 0
    %2307 = vmatpush1.bf16.msra.mxu0 0
    %2308 = vmatprep.subr.bf16.mxu0 0
    %2309 = vmatpush1.bf16.msra.mxu0 0
    %2310 = vmatprep.subr.bf16.mxu0 0
    %2311 = vmatpush1.bf16.msra.mxu0 0
    %2312 = vmatprep.subr.bf16.mxu0 0
    %2313 = vmatpush1.bf16.msra.mxu0 0
    %2314 = vmatprep.subr.bf16.mxu0 0
    %2315 = vmatpush1.bf16.msra.mxu0 0
    %2316 = vmatprep.subr.bf16.mxu0 0
    %2317 = vmatpush1.bf16.msra.mxu0 0
    %2318 = vmatprep.subr.bf16.mxu0 0
    %2319 = vmatpush1.bf16.msra.mxu0 0
    %2320 = vmatprep.subr.bf16.mxu0 0
    %2321 = vmatpush1.bf16.msra.mxu0 0
    %2322 = vmatprep.mubr.bf16.mxu0 0
    %2323 = vmatmul.mubr.bf16.gmra.mrb[0].mxu0 %v2285
    %v2324 = vpop.f32.mrb[0].mxu0
    %v2325 = vadd.f32 0.0, %v2324
    %v2326 = vpop.f32.mrb[0].mxu0
    %v2327 = vpop.f32.mrb[0].mxu0
    %v2328 = vpop.f32.mrb[0].mxu0
    %2329 = vdwg.mxu0
    %v2331 = vsel %vm1696, %v2142, 0
    %v2334 = vsel %vm1700, %v1680, 0
    %2336 = vmatprep.subr.bf16.mxu0 0
    %2337 = vmatpush1.bf16.msra.mxu0 %v2334
    %2338 = vmatprep.subr.bf16.mxu0 0
    %2339 = vmatpush1.bf16.msra.mxu0 0
    %2340 = vmatprep.subr.bf16.mxu0 0
    %2341 = vmatpush1.bf16.msra.mxu0 0
    %2342 = vmatprep.subr.bf16.mxu0 0
    %2343 = vmatpush1.bf16.msra.mxu0 0
    %2344 = vmatprep.subr.bf16.mxu0 0
    %2345 = vmatpush1.bf16.msra.mxu0 0
    %2346 = vmatprep.subr.bf16.mxu0 0
    %2347 = vmatpush1.bf16.msra.mxu0 0
    %2348 = vmatprep.subr.bf16.mxu0 0
    %2349 = vmatpush1.bf16.msra.mxu0 0
    %2350 = vmatprep.subr.bf16.mxu0 0
    %2351 = vmatpush1.bf16.msra.mxu0 0
    %2352 = vmatprep.subr.bf16.mxu0 0
    %2353 = vmatpush1.bf16.msra.mxu0 0
    %2354 = vmatprep.subr.bf16.mxu0 0
    %2355 = vmatpush1.bf16.msra.mxu0 0
    %2356 = vmatprep.subr.bf16.mxu0 0
    %2357 = vmatpush1.bf16.msra.mxu0 0
    %2358 = vmatprep.subr.bf16.mxu0 0
    %2359 = vmatpush1.bf16.msra.mxu0 0
    %2360 = vmatprep.subr.bf16.mxu0 0
    %2361 = vmatpush1.bf16.msra.mxu0 0
    %2362 = vmatprep.subr.bf16.mxu0 0
    %2363 = vmatpush1.bf16.msra.mxu0 0
    %2364 = vmatprep.subr.bf16.mxu0 0
    %2365 = vmatpush1.bf16.msra.mxu0 0
    %2366 = vmatprep.subr.bf16.mxu0 0
    %2367 = vmatpush1.bf16.msra.mxu0 0
    %2368 = vmatprep.mubr.bf16.mxu0 0
    %2369 = vmatmul.mubr.bf16.gmra.mrb[0].mxu0 %v2331
    %v2370 = vpop.f32.mrb[0].mxu0
    %v2371 = vadd.f32 0.0, %v2370
    %v2372 = vpop.f32.mrb[0].mxu0
    %v2373 = vpop.f32.mrb[0].mxu0
    %v2374 = vpop.f32.mrb[0].mxu0
    %2375 = vdwg.mxu0
    %v2377 = vsel %vm1696, %v2143, 0
    %v2380 = vsel %vm1700, %v1692, 0
    %2382 = vmatprep.subr.bf16.mxu0 0
    %2383 = vmatpush1.bf16.msra.mxu0 %v2380
    %2384 = vmatprep.subr.bf16.mxu0 0
    %2385 = vmatpush1.bf16.msra.mxu0 0
    %2386 = vmatprep.subr.bf16.mxu0 0
    %2387 = vmatpush1.bf16.msra.mxu0 0
    %2388 = vmatprep.subr.bf16.mxu0 0
    %2389 = vmatpush1.bf16.msra.mxu0 0
    %2390 = vmatprep.subr.bf16.mxu0 0
    %2391 = vmatpush1.bf16.msra.mxu0 0
    %2392 = vmatprep.subr.bf16.mxu0 0
    %2393 = vmatpush1.bf16.msra.mxu0 0
    %2394 = vmatprep.subr.bf16.mxu0 0
    %2395 = vmatpush1.bf16.msra.mxu0 0
    %2396 = vmatprep.subr.bf16.mxu0 0
    %2397 = vmatpush1.bf16.msra.mxu0 0
    %2398 = vmatprep.subr.bf16.mxu0 0
    %2399 = vmatpush1.bf16.msra.mxu0 0
    %2400 = vmatprep.subr.bf16.mxu0 0
    %2401 = vmatpush1.bf16.msra.mxu0 0
    %2402 = vmatprep.subr.bf16.mxu0 0
    %2403 = vmatpush1.bf16.msra.mxu0 0
    %2404 = vmatprep.subr.bf16.mxu0 0
    %2405 = vmatpush1.bf16.msra.mxu0 0
    %2406 = vmatprep.subr.bf16.mxu0 0
    %2407 = vmatpush1.bf16.msra.mxu0 0
    %2408 = vmatprep.subr.bf16.mxu0 0
    %2409 = vmatpush1.bf16.msra.mxu0 0
    %2410 = vmatprep.subr.bf16.mxu0 0
    %2411 = vmatpush1.bf16.msra.mxu0 0
    %2412 = vmatprep.subr.bf16.mxu0 0
    %2413 = vmatpush1.bf16.msra.mxu0 0
    %2414 = vmatprep.mubr.bf16.mxu0 0
    %2415 = vmatmul.mubr.bf16.gmra.mrb[0].mxu0 %v2377
    %v2416 = vpop.f32.mrb[0].mxu0
    %v2417 = vadd.f32 0.0, %v2416
    %v2418 = vpop.f32.mrb[0].mxu0
    %v2419 = vpop.f32.mrb[0].mxu0
    %v2420 = vpop.f32.mrb[0].mxu0
    %2421 = vdwg.mxu0
    %v2423 = vsel %vm1696, %v2144, 0
    %v2426 = vsel %vm1700, %v1683, 0
    %2428 = vmatprep.subr.bf16.mxu0 0
    %2429 = vmatpush1.bf16.msra.mxu0 %v2426
    %2430 = vmatprep.subr.bf16.mxu0 0
    %2431 = vmatpush1.bf16.msra.mxu0 0
    %2432 = vmatprep.subr.bf16.mxu0 0
    %2433 = vmatpush1.bf16.msra.mxu0 0
    %2434 = vmatprep.subr.bf16.mxu0 0
    %2435 = vmatpush1.bf16.msra.mxu0 0
    %2436 = vmatprep.subr.bf16.mxu0 0
    %2437 = vmatpush1.bf16.msra.mxu0 0
    %2438 = vmatprep.subr.bf16.mxu0 0
    %2439 = vmatpush1.bf16.msra.mxu0 0
    %2440 = vmatprep.subr.bf16.mxu0 0
    %2441 = vmatpush1.bf16.msra.mxu0 0
    %2442 = vmatprep.subr.bf16.mxu0 0
    %2443 = vmatpush1.bf16.msra.mxu0 0
    %2444 = vmatprep.subr.bf16.mxu0 0
    %2445 = vmatpush1.bf16.msra.mxu0 0
    %2446 = vmatprep.subr.bf16.mxu0 0
    %2447 = vmatpush1.bf16.msra.mxu0 0
    %2448 = vmatprep.subr.bf16.mxu0 0
    %2449 = vmatpush1.bf16.msra.mxu0 0
    %2450 = vmatprep.subr.bf16.mxu0 0
    %2451 = vmatpush1.bf16.msra.mxu0 0
    %2452 = vmatprep.subr.bf16.mxu0 0
    %2453 = vmatpush1.bf16.msra.mxu0 0
    %2454 = vmatprep.subr.bf16.mxu0 0
    %2455 = vmatpush1.bf16.msra.mxu0 0
    %2456 = vmatprep.subr.bf16.mxu0 0
    %2457 = vmatpush1.bf16.msra.mxu0 0
    %2458 = vmatprep.subr.bf16.mxu0 0
    %2459 = vmatpush1.bf16.msra.mxu0 0
    %2460 = vmatprep.mubr.bf16.mxu0 0
    %2461 = vmatmul.mubr.bf16.gmra.mrb[0].mxu0 %v2423
    %v2462 = vpop.f32.mrb[0].mxu0
    %v2463 = vadd.f32 0.0, %v2462
    %v2464 = vpop.f32.mrb[0].mxu0
    %v2465 = vpop.f32.mrb[0].mxu0
    %v2466 = vpop.f32.mrb[0].mxu0
    %2467 = vdwg.mxu0
    %v2469 = vsel %vm1696, %v2145, 0
    %v2472 = vsel %vm1700, %v1695, 0
    %2474 = vmatprep.subr.bf16.mxu0 0
    %2475 = vmatpush1.bf16.msra.mxu0 %v2472
    %2476 = vmatprep.subr.bf16.mxu0 0
    %2477 = vmatpush1.bf16.msra.mxu0 0
    %2478 = vmatprep.subr.bf16.mxu0 0
    %2479 = vmatpush1.bf16.msra.mxu0 0
    %2480 = vmatprep.subr.bf16.mxu0 0
    %2481 = vmatpush1.bf16.msra.mxu0 0
    %2482 = vmatprep.subr.bf16.mxu0 0
    %2483 = vmatpush1.bf16.msra.mxu0 0
    %2484 = vmatprep.subr.bf16.mxu0 0
    %2485 = vmatpush1.bf16.msra.mxu0 0
    %2486 = vmatprep.subr.bf16.mxu0 0
    %2487 = vmatpush1.bf16.msra.mxu0 0
    %2488 = vmatprep.subr.bf16.mxu0 0
    %2489 = vmatpush1.bf16.msra.mxu0 0
    %2490 = vmatprep.subr.bf16.mxu0 0
    %2491 = vmatpush1.bf16.msra.mxu0 0
    %2492 = vmatprep.subr.bf16.mxu0 0
    %2493 = vmatpush1.bf16.msra.mxu0 0
    %2494 = vmatprep.subr.bf16.mxu0 0
    %2495 = vmatpush1.bf16.msra.mxu0 0
    %2496 = vmatprep.subr.bf16.mxu0 0
    %2497 = vmatpush1.bf16.msra.mxu0 0
    %2498 = vmatprep.subr.bf16.mxu0 0
    %2499 = vmatpush1.bf16.msra.mxu0 0
    %2500 = vmatprep.subr.bf16.mxu0 0
    %2501 = vmatpush1.bf16.msra.mxu0 0
    %2502 = vmatprep.subr.bf16.mxu0 0
    %2503 = vmatpush1.bf16.msra.mxu0 0
    %2504 = vmatprep.subr.bf16.mxu0 0
    %2505 = vmatpush1.bf16.msra.mxu0 0
    %2506 = vmatprep.mubr.bf16.mxu0 0
    %2507 = vmatmul.mubr.bf16.gmra.mrb[0].mxu0 %v2469
    %v2508 = vpop.f32.mrb[0].mxu0
    %v2509 = vadd.f32 0.0, %v2508
    %v2510 = vpop.f32.mrb[0].mxu0
    %v2511 = vpop.f32.mrb[0].mxu0
    %v2512 = vpop.f32.mrb[0].mxu0
    %2513 = vdwg.mxu0
    %v2514 = vrcp.pop %v2116
    %v2515 = vrcp.pop %v2119
    %v2516 = vrcp.pop %v2122
    %v2517 = vrcp.pop %v2125
    %v2518 = vrcp.pop %v2128
    %v2519 = vrcp.pop %v2131
    %v2520 = vrcp.pop %v2134
    %v2521 = vrcp.pop %v2137
    %v2522 = vmul.f32 %v2187, %v2514
    %v2523 = vmul.f32 %v2233, %v2515
    %v2524 = vmul.f32 %v2279, %v2516
    %v2525 = vmul.f32 %v2325, %v2517
    %v2526 = vmul.f32 %v2371, %v2518
    %v2527 = vmul.f32 %v2417, %v2519
    %v2528 = vmul.f32 %v2463, %v2520
    %v2529 = vmul.f32 %v2509, %v2521
    %v2530 = vpack.c.bf16 %v2522, %v2522
    %v2532 = vunpack.c.l.s4 1983009808
    %v2533 = vunpack.c.0.s8 %v2532
    %v2534 = vlaneseq
    %v2535 = vshrl.u32 %v2534, 7
    %v2536 = vsub.s32 %v2533, %v2535
    %v2537 = vrot.slane %v2530, %v2536
    %v2538 = vpack.c.bf16 %v2526, %v2526
    %v2540 = vunpack.c.l.s4 1983009808
    %v2541 = vunpack.c.0.s8 %v2540
    %v2542 = vlaneseq
    %v2543 = vshrl.u32 %v2542, 7
    %v2544 = vsub.s32 %v2541, %v2543
    %v2545 = vrot.slane %v2538, %v2544
    %v2546 = vcombine.low %v2537, %v2545
    %v2547 = vcombine.high %v2537, %v2545
    %v2549 = vunpack.c.l.s4 1934713408
    %v2550 = vunpack.c.0.s8 %v2549
    %v2551 = vlaneseq
    %v2552 = vshrl.u32 %v2551, 7
    %v2553 = vsub.s32 %v2550, %v2552
    %v2554 = vrot.slane %v2546, %v2553
    %v2556 = vunpack.c.l.s4 1934713408
    %v2557 = vunpack.c.0.s8 %v2556
    %v2558 = vlaneseq
    %v2559 = vshrl.u32 %v2558, 7
    %v2560 = vsub.s32 %v2557, %v2559
    %v2561 = vrot.slane %v2547, %v2560
    %v2562 = vcombine.high %v2554, 0
    %v2563 = vcombine.high %v2561, 0
    %v2564 = vpack.c.bf16 %v2524, %v2524
    %v2566 = vunpack.c.l.s4 1983009808
    %v2567 = vunpack.c.0.s8 %v2566
    %v2568 = vlaneseq
    %v2569 = vshrl.u32 %v2568, 7
    %v2570 = vsub.s32 %v2567, %v2569
    %v2571 = vrot.slane %v2564, %v2570
    %v2572 = vpack.c.bf16 %v2528, %v2528
    %v2574 = vunpack.c.l.s4 1983009808
    %v2575 = vunpack.c.0.s8 %v2574
    %v2576 = vlaneseq
    %v2577 = vshrl.u32 %v2576, 7
    %v2578 = vsub.s32 %v2575, %v2577
    %v2579 = vrot.slane %v2572, %v2578
    %v2580 = vcombine.low %v2571, %v2579
    %v2581 = vcombine.high %v2571, %v2579
    %v2583 = vunpack.c.l.s4 1934713408
    %v2584 = vunpack.c.0.s8 %v2583
    %v2585 = vlaneseq
    %v2586 = vshrl.u32 %v2585, 7
    %v2587 = vsub.s32 %v2584, %v2586
    %v2588 = vrot.slane %v2580, %v2587
    %v2590 = vunpack.c.l.s4 1934713408
    %v2591 = vunpack.c.0.s8 %v2590
    %v2592 = vlaneseq
    %v2593 = vshrl.u32 %v2592, 7
    %v2594 = vsub.s32 %v2591, %v2593
    %v2595 = vrot.slane %v2581, %v2594
    %v2596 = vcombine.high %v2588, 0
    %v2597 = vcombine.high %v2595, 0
    %v2598 = vpack.c.bf16 %v2523, %v2523
    %v2600 = vunpack.c.l.s4 1983009808
    %v2601 = vunpack.c.0.s8 %v2600
    %v2602 = vlaneseq
    %v2603 = vshrl.u32 %v2602, 7
    %v2604 = vsub.s32 %v2601, %v2603
    %v2605 = vrot.slane %v2598, %v2604
    %v2606 = vpack.c.bf16 %v2527, %v2527
    %v2608 = vunpack.c.l.s4 1983009808
    %v2609 = vunpack.c.0.s8 %v2608
    %v2610 = vlaneseq
    %v2611 = vshrl.u32 %v2610, 7
    %v2612 = vsub.s32 %v2609, %v2611
    %v2613 = vrot.slane %v2606, %v2612
    %v2614 = vcombine.low %v2605, %v2613
    %v2615 = vcombine.high %v2605, %v2613
    %v2617 = vunpack.c.l.s4 1934713408
    %v2618 = vunpack.c.0.s8 %v2617
    %v2619 = vlaneseq
    %v2620 = vshrl.u32 %v2619, 7
    %v2621 = vsub.s32 %v2618, %v2620
    %v2622 = vrot.slane %v2614, %v2621
    %v2624 = vunpack.c.l.s4 1934713408
    %v2625 = vunpack.c.0.s8 %v2624
    %v2626 = vlaneseq
    %v2627 = vshrl.u32 %v2626, 7
    %v2628 = vsub.s32 %v2625, %v2627
    %v2629 = vrot.slane %v2615, %v2628
    %v2630 = vcombine.high %v2622, 0
    %v2631 = vcombine.high %v2629, 0
    %v2632 = vpack.c.bf16 %v2525, %v2525
    %v2634 = vunpack.c.l.s4 1983009808
    %v2635 = vunpack.c.0.s8 %v2634
    %v2636 = vlaneseq
    %v2637 = vshrl.u32 %v2636, 7
    %v2638 = vsub.s32 %v2635, %v2637
    %v2639 = vrot.slane %v2632, %v2638
    %v2640 = vpack.c.bf16 %v2529, %v2529
    %v2642 = vunpack.c.l.s4 1983009808
    %v2643 = vunpack.c.0.s8 %v2642
    %v2644 = vlaneseq
    %v2645 = vshrl.u32 %v2644, 7
    %v2646 = vsub.s32 %v2643, %v2645
    %v2647 = vrot.slane %v2640, %v2646
    %v2648 = vcombine.low %v2639, %v2647
    %v2649 = vcombine.high %v2639, %v2647
    %v2651 = vunpack.c.l.s4 1934713408
    %v2652 = vunpack.c.0.s8 %v2651
    %v2653 = vlaneseq
    %v2654 = vshrl.u32 %v2653, 7
    %v2655 = vsub.s32 %v2652, %v2654
    %v2656 = vrot.slane %v2648, %v2655
    %v2658 = vunpack.c.l.s4 1934713408
    %v2659 = vunpack.c.0.s8 %v2658
    %v2660 = vlaneseq
    %v2661 = vshrl.u32 %v2660, 7
    %v2662 = vsub.s32 %v2659, %v2661
    %v2663 = vrot.slane %v2649, %v2662
    %v2664 = vcombine.high %v2656, 0
    %v2665 = vcombine.high %v2663, 0
    %v2668 = vpack.i.b16 %v2588, %v2554
    %v2670 = vshrl.u32 %v2554, 16
    %v2671 = vshrl.u32 %v2588, 16
    %v2672 = vpack.i.b16 %v2671, %v2670
    %v2676 = vpack.i.b16 %v2596, %v2562
    %v2678 = vshrl.u32 %v2562, 16
    %v2679 = vshrl.u32 %v2596, 16
    %v2680 = vpack.i.b16 %v2679, %v2678
    %v2684 = vpack.i.b16 %v2595, %v2561
    %v2686 = vshrl.u32 %v2561, 16
    %v2687 = vshrl.u32 %v2595, 16
    %v2688 = vpack.i.b16 %v2687, %v2686
    %v2692 = vpack.i.b16 %v2597, %v2563
    %v2694 = vshrl.u32 %v2563, 16
    %v2695 = vshrl.u32 %v2597, 16
    %v2696 = vpack.i.b16 %v2695, %v2694
    %v2700 = vpack.i.b16 %v2656, %v2622
    %v2702 = vshrl.u32 %v2622, 16
    %v2703 = vshrl.u32 %v2656, 16
    %v2704 = vpack.i.b16 %v2703, %v2702
    %v2708 = vpack.i.b16 %v2664, %v2630
    %v2710 = vshrl.u32 %v2630, 16
    %v2711 = vshrl.u32 %v2664, 16
    %v2712 = vpack.i.b16 %v2711, %v2710
    %v2716 = vpack.i.b16 %v2663, %v2629
    %v2718 = vshrl.u32 %v2629, 16
    %v2719 = vshrl.u32 %v2663, 16
    %v2720 = vpack.i.b16 %v2719, %v2718
    %v2724 = vpack.i.b16 %v2665, %v2631
    %v2726 = vshrl.u32 %v2631, 16
    %v2727 = vshrl.u32 %v2665, 16
    %v2728 = vpack.i.b16 %v2727, %v2726
    %v2730 = vcombine.low %v2668, %v2684
    %v2732 = vunpack.c.l.s4 1983009808
    %v2733 = vunpack.c.0.s8 %v2732
    %v2734 = vlaneseq
    %v2735 = vshrl.u32 %v2734, 7
    %v2736 = vsub.s32 %v2733, %v2735
    %v2737 = vrot.slane %v2730, %v2736
    %v2738 = vcombine.low %v2676, %v2692
    %v2740 = vunpack.c.l.s4 1983009808
    %v2741 = vunpack.c.0.s8 %v2740
    %v2742 = vlaneseq
    %v2743 = vshrl.u32 %v2742, 7
    %v2744 = vsub.s32 %v2741, %v2743
    %v2745 = vrot.slane %v2738, %v2744
    %v2746 = vcombine.low %v2700, %v2716
    %v2748 = vunpack.c.l.s4 1983009808
    %v2749 = vunpack.c.0.s8 %v2748
    %v2750 = vlaneseq
    %v2751 = vshrl.u32 %v2750, 7
    %v2752 = vsub.s32 %v2749, %v2751
    %v2753 = vrot.slane %v2746, %v2752
    %v2754 = vcombine.low %v2708, %v2724
    %v2756 = vunpack.c.l.s4 1983009808
    %v2757 = vunpack.c.0.s8 %v2756
    %v2758 = vlaneseq
    %v2759 = vshrl.u32 %v2758, 7
    %v2760 = vsub.s32 %v2757, %v2759
    %v2761 = vrot.slane %v2754, %v2760
    %v2762 = vcombine.low %v2737, %v2745
    %v2764 = vunpack.c.l.s4 1934713408
    %v2765 = vunpack.c.0.s8 %v2764
    %v2766 = vlaneseq
    %v2767 = vshrl.u32 %v2766, 7
    %v2768 = vsub.s32 %v2765, %v2767
    %v2769 = vrot.slane %v2762, %v2768
    %v2770 = vcombine.low %v2753, %v2761
    %v2772 = vunpack.c.l.s4 1934713408
    %v2773 = vunpack.c.0.s8 %v2772
    %v2774 = vlaneseq
    %v2775 = vshrl.u32 %v2774, 7
    %v2776 = vsub.s32 %v2773, %v2775
    %v2777 = vrot.slane %v2770, %v2776
    %v2778 = vcombine.low %v2769, %v2777
    %v2779 = vcombine.high %v2769, %v2777
    %v2780 = vcombine.low %v2672, %v2688
    %v2782 = vunpack.c.l.s4 1983009808
    %v2783 = vunpack.c.0.s8 %v2782
    %v2784 = vlaneseq
    %v2785 = vshrl.u32 %v2784, 7
    %v2786 = vsub.s32 %v2783, %v2785
    %v2787 = vrot.slane %v2780, %v2786
    %v2788 = vcombine.low %v2680, %v2696
    %v2790 = vunpack.c.l.s4 1983009808
    %v2791 = vunpack.c.0.s8 %v2790
    %v2792 = vlaneseq
    %v2793 = vshrl.u32 %v2792, 7
    %v2794 = vsub.s32 %v2791, %v2793
    %v2795 = vrot.slane %v2788, %v2794
    %v2796 = vcombine.low %v2704, %v2720
    %v2798 = vunpack.c.l.s4 1983009808
    %v2799 = vunpack.c.0.s8 %v2798
    %v2800 = vlaneseq
    %v2801 = vshrl.u32 %v2800, 7
    %v2802 = vsub.s32 %v2799, %v2801
    %v2803 = vrot.slane %v2796, %v2802
    %v2804 = vcombine.low %v2712, %v2728
    %v2806 = vunpack.c.l.s4 1983009808
    %v2807 = vunpack.c.0.s8 %v2806
    %v2808 = vlaneseq
    %v2809 = vshrl.u32 %v2808, 7
    %v2810 = vsub.s32 %v2807, %v2809
    %v2811 = vrot.slane %v2804, %v2810
    %v2812 = vcombine.low %v2787, %v2795
    %v2814 = vunpack.c.l.s4 1934713408
    %v2815 = vunpack.c.0.s8 %v2814
    %v2816 = vlaneseq
    %v2817 = vshrl.u32 %v2816, 7
    %v2818 = vsub.s32 %v2815, %v2817
    %v2819 = vrot.slane %v2812, %v2818
    %v2820 = vcombine.low %v2803, %v2811
    %v2822 = vunpack.c.l.s4 1934713408
    %v2823 = vunpack.c.0.s8 %v2822
    %v2824 = vlaneseq
    %v2825 = vshrl.u32 %v2824, 7
    %v2826 = vsub.s32 %v2823, %v2825
    %v2827 = vrot.slane %v2820, %v2826
    %v2828 = vcombine.low %v2819, %v2827
    %v2829 = vcombine.high %v2819, %v2827
    %v2832 = vpack.i.b16 %v2828, %v2778
    %v2833 = vshrl.u32 %v2778, 16
    %v2834 = vshrl.u32 %v2828, 16
    %v2835 = vpack.i.b16 %v2834, %v2833
    %v2838 = vpack.i.b16 %v2829, %v2779
    %v2839 = vshrl.u32 %v2779, 16
    %v2840 = vshrl.u32 %v2829, 16
    %v2841 = vpack.i.b16 %v2840, %v2839
    %2842 = vrot.lane.b32.xlu0 %v2835, 8
    %v2843 = vpop.permute.xlu0 %2842
    %2844 = vrot.lane.b32.xlu0 %v2838, 16
    %v2845 = vpop.permute.xlu0 %2844
    %2846 = vrot.lane.b32.xlu0 %v2841, 24
    %v2847 = vpop.permute.xlu0 %2846
    %v2850 = vsel %vm1696, %v2832, %v2843
    %vm2851 = vcmask 130048
    %v2853 = vsel %vm2851, %v2850, %v2845
    %vm2854 = vcmask 195584
    %v2856 = vsel %vm2854, %v2853, %v2847
    %v2857 = vld [vmem:[#allocation7] sm:$0xf]
    %v2858 = vld [vmem:[#allocation7 + $0x4] sm:$0xf]
    %v2859 = vld [vmem:[#allocation7 + $0x8] sm:$0xf]
    %v2860 = vld [vmem:[#allocation7 + $0xc] sm:$0xf]
    %v2861 = vld [vmem:[%s4] sm:$0x1]
    %v2863 = vlaneseq
    %v2864 = vshrl.u32 %v2863, 7
    %v2865 = vsub.s32 0, %v2864
    %v2866 = vrot.slane %v2861, %v2865
    %v2872 = vunpack.c.l.b16 %v2857
    %v2873 = vunpack.c.l.b16 %v2858
    %v2874 = vunpack.c.l.b16 %v2859
    %v2875 = vunpack.c.l.b16 %v2860
    %v2876 = vpack.c.b16 %v2873, %v2872
    %v2877 = vpack.c.b16 %v2875, %v2874
    %v2880 = vsel %vm93, %v2856, 0
    %2882 = vmatprep.subr.bf16.mxu0 0
    %2883 = vmatpush1.bf16.msra.mxu0 %v2876
    %2884 = vmatprep.subr.bf16.mxu0 0
    %2885 = vmatpush1.bf16.msra.mxu0 %v2877
    %2886 = vmatprep.subr.bf16.mxu0 0
    %2887 = vmatpush1.bf16.msra.mxu0 0
    %2888 = vmatprep.subr.bf16.mxu0 0
    %2889 = vmatpush1.bf16.msra.mxu0 0
    %2890 = vmatprep.subr.bf16.mxu0 0
    %2891 = vmatpush1.bf16.msra.mxu0 0
    %2892 = vmatprep.subr.bf16.mxu0 0
    %2893 = vmatpush1.bf16.msra.mxu0 0
    %2894 = vmatprep.subr.bf16.mxu0 0
    %2895 = vmatpush1.bf16.msra.mxu0 0
    %2896 = vmatprep.subr.bf16.mxu0 0
    %2897 = vmatpush1.bf16.msra.mxu0 0
    %2898 = vmatprep.subr.bf16.mxu0 0
    %2899 = vmatpush1.bf16.msra.mxu0 0
    %2900 = vmatprep.subr.bf16.mxu0 0
    %2901 = vmatpush1.bf16.msra.mxu0 0
    %2902 = vmatprep.subr.bf16.mxu0 0
    %2903 = vmatpush1.bf16.msra.mxu0 0
    %2904 = vmatprep.subr.bf16.mxu0 0
    %2905 = vmatpush1.bf16.msra.mxu0 0
    %2906 = vmatprep.subr.bf16.mxu0 0
    %2907 = vmatpush1.bf16.msra.mxu0 0
    %2908 = vmatprep.subr.bf16.mxu0 0
    %2909 = vmatpush1.bf16.msra.mxu0 0
    %2910 = vmatprep.subr.bf16.mxu0 0
    %2911 = vmatpush1.bf16.msra.mxu0 0
    %2912 = vmatprep.subr.bf16.mxu0 0
    %2913 = vmatpush1.bf16.msra.mxu0 0
    %2914 = vmatprep.mubr.bf16.mxu0 0
    %2915 = vmatmul.mubr.bf16.gmra.mrb[0].mxu0 %v2880
    %v2916 = vpop.f32.mrb[0].mxu0
    %v2917 = vadd.f32 %v2866, %v2916
    %v2918 = vpop.f32.mrb[0].mxu0
    %v2919 = vpop.f32.mrb[0].mxu0
    %v2920 = vadd.f32 %v2866, %v2919
    %v2921 = vpop.f32.mrb[0].mxu0
    %2922 = vdwg.mxu0
    %2923 = vst.msk [vmem:[#allocation8] sm:$0xff] %vm93, %v2917
    %2924 = vst.msk [vmem:[#allocation8 + $0x8] sm:$0xff] %vm93, %v2920
    // Predicated region
    $region34: #{tpu_custom_call.1} parent=1 // pred_check
      _
    $region35: #{tpu_custom_call.1} parent=1 // pred_check_branch
      %2926 = sbr.rel (0) target = $region37
    $region36: #{tpu_custom_call.1} parent=1 // pred_region
      %s2928 = ssub.s32 256, 256
      %2929 = vsyncadd [#allocation4], %s2928
      %s2930 = sshll.u32 [#allocation8], 4
      %s2931 = int_to_ptr.vmem [resolvable:$true] %s2930
      %2936 = dma.vmem_to_hbm [thread:$0]  %s2931, 256, %s5, [#allocation4], 128, 128, 8
    $region37: #{tpu_custom_call.1} parent=1 // pred_fallthru
      _
    // Predicated region
    $region38: #{tpu_custom_call.1} parent=1 // pred_check
      _
    $region39: #{tpu_custom_call.1} parent=1 // pred_check_branch
      %2938 = sbr.rel (0) target = $region41
    $region40: #{tpu_custom_call.1} parent=1 // pred_region
      %2939 = dma.done [#allocation4], 256
    $region41: #{tpu_custom_call.1} parent=1 // pred_fallthru
      _
    %2940 = vsyncpa [#allocation3], 1
    %2941 = vsyncpa [#allocation6], 1
    %2942 = vsyncpa [#allocation4], 1

</llo_original>
